<compile_context>
chip_gen: v6e
topology: v6e:2x2x1
jax: 0.10.0
libtpu: 0.0.40
codegen_flags: <defaults>
</compile_context>

<pallas_src>
import jax
import jax.numpy as jnp
from jax import lax
from jax.experimental import pallas as pl
from jax.experimental.pallas import tpu as pltpu


_TARGET_GROUPS_PER_STEP = 64  # amortize per-grid-step overhead over many groups


def _cdiv(a, b):
    return -(-a // b)


def _make_mmd_kernel(chunk: int, p_pad: int, chunks_per_step: int):
    """Per grid step: `chunks_per_step` chunks of `chunk` groups; each chunk is
    one MXU exponent matmul + one exp + one K @ D matvec + one sublane reduce."""
    cp = chunk * p_pad                       # rows / lanes per chunk
    dn = (((1,), (0,)), ((), ()))            # standard (m,k) x (k,n) contraction
    align = cp & (-cp)                       # largest pow2 divisor of cp (ds hint)

    def _chunk_result(a, b, d):
        # exponent[i,j] = 2<p_i,q_j>/w - |p_i|^2/w - |q_j|^2/w = -|p_i-q_j|^2/w <= 0
        expo = lax.dot_general(a, b, dn, precision=lax.Precision.HIGHEST,
                               preferred_element_type=jnp.float32)    # (cp, cp)
        k = jnp.exp(expo)                                             # EUP, <= 1
        # block-diagonal signed decay: kv[i, g] = sum_{j in group g} K[i, j] * d_j
        kv = lax.dot_general(k, d, dn, precision=lax.Precision.HIGHEST,
                             preferred_element_type=jnp.float32)      # (cp, chunk)
        # result[g] = sum_{i in group g} d_i * kv[i, g] = s_xx - 2 s_xy + s_yy
        return jnp.sum(kv * d, axis=0, keepdims=True)                 # (1, chunk)

    def kernel(a_ref, b_ref, d_ref, o_ref):
        # a_ref: (1, cps*cp, 4)      augmented lhs slabs
        # b_ref: (1, 4, cps*cp)      augmented rhs slabs (pre-transposed, lane-dense)
        # d_ref: (1, cps*cp, chunk)  block-diagonal signed decay
        # o_ref: (1, cps, chunk)     fused per-group sums
        def do_chunk(c, base):
            a = a_ref[0, pl.ds(base, cp), :]
            b = b_ref[0, :, pl.ds(base, cp)]
            d = d_ref[0, pl.ds(base, cp), :]
            o_ref[0, pl.ds(c, 1), :] = _chunk_result(a, b, d)

        if chunks_per_step == 1:
            do_chunk(0, 0)
        else:
            def body(c, carry):
                do_chunk(c, pl.multiple_of(c * cp, align))
                return carry
            lax.fori_loop(0, chunks_per_step, body, 0)   # bounded live ranges

    return kernel


def mmd_forward(X, Y, weights, num_samples, *, width=2.0, decay_exponent=1.0,
                target_groups_per_step=_TARGET_GROUPS_PER_STEP):
    """X: (G, N, 2), Y: (G, M, 2) raw (start, end) points; weights/num_samples:
    (G,).  Returns the summed, weighted MMD (scalar), matching MMD.forward."""
    X = jnp.asarray(X, jnp.float32)
    Y = jnp.asarray(Y, jnp.float32)
    G, N, _ = X.shape
    _, M, _ = Y.shape
    inv_w = 1.0 / float(width)
    two_inv_w = 2.0 / float(width)

    scale = (jnp.asarray(weights, jnp.float32)
             / jnp.asarray(num_samples, jnp.float32) ** 2)

    # ---------------- sizing ------------------------------------------------
    P = N + M
    p_pad = max(8, _cdiv(P, 8) * 8)              # points per group, sublane-padded
    chunk = max(1, 128 // p_pad)                 # groups per MXU chunk (fill 128 lanes)
    total_chunks = _cdiv(G, chunk)
    cps = max(1, target_groups_per_step // chunk)
    if total_chunks > 1:
        cps = min(cps, max(1, total_chunks // 2))   # keep >= 2 grid steps (v7x 2 TCs)
    else:
        cps = 1
    gps = cps * chunk                            # groups per grid step
    num_steps = _cdiv(G, gps)
    g_pad = num_steps * gps

    # -------- combined, lifetime-transformed point set per group ------------
    pts = jnp.concatenate([X, Y], axis=1)                         # (G, P, 2)
    if p_pad != P:
        pts = jnp.pad(pts, ((0, 0), (0, p_pad - P), (0, 0)))      # zero pad points
    s = pts[..., 0]                                               # start
    lt = pts[..., 1] - pts[..., 0]                                # lifetime = end-start
    n = (s * s + lt * lt) * inv_w                                 # |p|^2 / width
    ones = jnp.ones_like(s)

    # lhs rows: [2 s / w, 2 lt / w, -|p|^2/w, 1]
    A = jnp.stack([s * two_inv_w, lt * two_inv_w, -n, ones], axis=-1)   # (G, p_pad, 4)
    # rhs rows: [s, lt, 1, -|q|^2/w]  (transposed below to lane-dense (4, pts))
    B = jnp.stack([s, lt, ones, -n], axis=-1)                            # (G, p_pad, 4)

    # signed decay: +lt^a for X points, -lt^a for Y points, 0 for padding.
    point_idx = jnp.arange(p_pad)
    sign = jnp.where(point_idx < N, 1.0,
                     jnp.where(point_idx < P, -1.0, 0.0)).astype(jnp.float32)
    lt_safe = jnp.where(point_idx[None, :] < P, lt, 1.0)         # guard 0**frac on pads
    if decay_exponent == 1.0:
        dec = lt_safe
    else:
        dec = lt_safe ** decay_exponent   # same NaN behavior as the reference for lt<=0
    d_signed = dec * sign[None, :]                                # (G, p_pad)

    # -------- pad group axis and reshape into per-step, MXU-ready slabs -----
    pad_g = g_pad - G
    if pad_g:
        A = jnp.pad(A, ((0, pad_g), (0, 0), (0, 0)))
        B = jnp.pad(B, ((0, pad_g), (0, 0), (0, 0)))
        d_signed = jnp.pad(d_signed, ((0, pad_g), (0, 0)))        # zero decay => zero MMD

    A_full = A.reshape(num_steps, gps * p_pad, 4)
    B_full = jnp.transpose(B.reshape(num_steps, gps * p_pad, 4), (0, 2, 1))  # (steps,4,gps*p_pad)

    # block-diagonal signed decay per chunk: D[row, col] = d[row] * (group_in_chunk == col)
    sel = jnp.eye(chunk, dtype=jnp.float32)[jnp.arange(g_pad) % chunk]       # (g_pad, chunk)
    D_full = (d_signed[:, :, None] * sel[:, None, :]).reshape(num_steps, gps * p_pad, chunk)

    kernel = _make_mmd_kernel(chunk, p_pad, cps)

    per_group = pl.pallas_call(
        kernel,
        out_shape=jax.ShapeDtypeStruct((num_steps, cps, chunk), jnp.float32),
        grid=(num_steps,),
        in_specs=[
            pl.BlockSpec((1, gps * p_pad, 4), lambda i: (i, 0, 0)),
            pl.BlockSpec((1, 4, gps * p_pad), lambda i: (i, 0, 0)),
            pl.BlockSpec((1, gps * p_pad, chunk), lambda i: (i, 0, 0)),
        ],
        out_specs=pl.BlockSpec((1, cps, chunk), lambda i: (i, 0, 0)),
        compiler_params=pltpu.CompilerParams(
            dimension_semantics=("parallel",),
        ),
    )(A_full, B_full, D_full)

    # per-group scaling and the final sum are O(G) -- plain JAX.
    per_group = per_group.reshape(g_pad)[:G]
    return jnp.sum(per_group * scale)


def mmd_reference(X, Y, weights, num_samples, *, width=2.0, decay_exponent=1.0):
    """Pure-JAX reference mirroring the PyTorch module (non-empty groups)."""
    X = jnp.asarray(X, jnp.float32)
    Y = jnp.asarray(Y, jnp.float32)
    weights = jnp.asarray(weights, jnp.float32)
    num_samples = jnp.asarray(num_samples, jnp.float32)

    def single(A, B):
        def sq(Pm, Qm):
            return jnp.sum((Pm[:, None, :] - Qm[None, :, :]) ** 2, axis=-1)
        Ka = jnp.exp(-sq(A, A) / width)
        Kb = jnp.exp(-sq(B, B) / width)
        Kab = jnp.exp(-sq(A, B) / width)
        da = A[:, 1] ** decay_exponent
        db = B[:, 1] ** decay_exponent
        return (jnp.sum(Ka * da[:, None] * da[None, :])
                - 2.0 * jnp.sum(Kab * da[:, None] * db[None, :])
                + jnp.sum(Kb * db[:, None] * db[None, :]))

    total = 0.0
    for i in range(X.shape[0]):
        DX, DY = X[i], Y[i]
        DX_lt = jnp.stack([DX[:, 0], DX[:, 1] - DX[:, 0]], axis=1)
        DY_lt = jnp.stack([DY[:, 0], DY[:, 1] - DY[:, 0]], axis=1)
        total = total + single(DX_lt, DY_lt) * (weights[i] / num_samples[i] ** 2)
    return total


if __name__ == "__main__":
    key = jax.random.PRNGKey(0)
    G, N, M = 2, 8, 8
    k1, k2, k3, k4 = jax.random.split(key, 4)

    # points (start, end) with end > start so the lifetime column is positive
    x_start = jax.random.uniform(k1, (G, N, 1), jnp.float32, 0.0, 1.0)
    x_len = jax.random.uniform(k2, (G, N, 1), jnp.float32, 0.1, 1.0)
    X = jnp.concatenate([x_start, x_start + x_len], axis=-1)     # (G, N, 2)

    y_start = jax.random.uniform(k3, (G, M, 1), jnp.float32, 0.0, 1.0)
    y_len = jax.random.uniform(k4, (G, M, 1), jnp.float32, 0.1, 1.0)
    Y = jnp.concatenate([y_start, y_start + y_len], axis=-1)     # (G, M, 2)

    weights = jnp.array([1.0, 2.0], jnp.float32)
    num_samples = jnp.array([4.0, 5.0], jnp.float32)
    width = 2.0
    decay_exponent = 1.0

    out = mmd_forward(X, Y, weights, num_samples,
                      width=width, decay_exponent=decay_exponent)
    out = jax.block_until_ready(out)

    ref = mmd_reference(X, Y, weights, num_samples,
                        width=width, decay_exponent=decay_exponent)
    assert jnp.allclose(out, ref, rtol=1e-4, atol=1e-5), (out, ref)

    print("KERNEL_OK")
</pallas_src>

<mosaic_0001>
module attributes {stable_mosaic.version = 11 : i64} {
  func.func @kernel(%arg0: i32, %arg1: memref<1x128x4xf32, #tpu.memory_space<vmem>>, %arg2: memref<1x4x128xf32, #tpu.memory_space<vmem>>, %arg3: memref<1x128x8xf32, #tpu.memory_space<vmem>>, %arg4: memref<1x1x8xf32, #tpu.memory_space<vmem>>) attributes {dimension_semantics = [#tpu.dimension_semantics<parallel>], iteration_bounds = array<i64: 1>, scalar_prefetch = 0 : i64, scratch_operands = 0 : i64, tpu.core_type = #tpu.core_type<tc>, window_params = [{transform_indices = @transform_0, window_bounds = array<i64: 1, 128, 4>}, {transform_indices = @transform_1, window_bounds = array<i64: 1, 4, 128>}, {transform_indices = @transform_2, window_bounds = array<i64: 1, 128, 8>}, {transform_indices = @transform_3, window_bounds = array<i64: 1, 1, 8>}]} {
    %c0 = arith.constant 0 : index
    %c0_0 = arith.constant 0 : index
    %c0_1 = arith.constant 0 : index
    %0 = vector.load %arg1[%c0, %c0_0, %c0_1] : memref<1x128x4xf32, #tpu.memory_space<vmem>>, vector<1x128x4xf32>
    %1 = vector.shape_cast %0 : vector<1x128x4xf32> to vector<128x4xf32>
    %c0_2 = arith.constant 0 : index
    %c0_3 = arith.constant 0 : index
    %c0_4 = arith.constant 0 : index
    %2 = vector.load %arg2[%c0_2, %c0_3, %c0_4] : memref<1x4x128xf32, #tpu.memory_space<vmem>>, vector<1x4x128xf32>
    %3 = vector.shape_cast %2 : vector<1x4x128xf32> to vector<4x128xf32>
    %c0_5 = arith.constant 0 : index
    %c0_6 = arith.constant 0 : index
    %c0_7 = arith.constant 0 : index
    %4 = vector.load %arg3[%c0_5, %c0_6, %c0_7] : memref<1x128x8xf32, #tpu.memory_space<vmem>>, vector<1x128x8xf32>
    %5 = vector.shape_cast %4 : vector<1x128x8xf32> to vector<128x8xf32>
    %cst = arith.constant dense<0.000000e+00> : vector<128x128xf32>
    %6 = tpu.matmul %1, %3, %cst {dimension_numbers = #tpu.dot_dimension_numbers<[1], [0], [0], [1], [0, 0, 1, 1], [], []>, precision = #tpu.contract_precision<fp32>} : vector<128x4xf32>, vector<4x128xf32>, vector<128x128xf32> -> vector<128x128xf32>
    %7 = math.exp %6 : vector<128x128xf32>
    %cst_8 = arith.constant dense<0.000000e+00> : vector<128x8xf32>
    %8 = tpu.matmul %7, %5, %cst_8 {dimension_numbers = #tpu.dot_dimension_numbers<[1], [0], [0], [1], [0, 0, 1, 1], [], []>, precision = #tpu.contract_precision<fp32>} : vector<128x128xf32>, vector<128x8xf32>, vector<128x8xf32> -> vector<128x8xf32>
    %9 = arith.mulf %8, %5 : vector<128x8xf32>
    %cst_9 = arith.constant dense<0.000000e+00> : vector<8xf32>
    %10 = vector.multi_reduction <add>, %9, %cst_9 [0] : vector<128x8xf32> to vector<8xf32>
    %11 = vector.shape_cast %10 : vector<8xf32> to vector<1x8xf32>
    %c0_10 = arith.constant 0 : index
    %c0_11 = arith.constant 0 : index
    %c0_12 = arith.constant 0 : index
    %12 = vector.load %arg4[%c0_10, %c0_11, %c0_12] : memref<1x1x8xf32, #tpu.memory_space<vmem>>, vector<1x1x8xf32>
    %13 = vector.shape_cast %12 : vector<1x1x8xf32> to vector<1x8xf32>
    %14 = vector.shape_cast %11 : vector<1x8xf32> to vector<1x1x8xf32>
    tpu.vector_store %arg4[%c0_10, %c0_11, %c0_12], %14 {strides = array<i32>} : memref<1x1x8xf32, #tpu.memory_space<vmem>>, vector<1x1x8xf32>,
    return
  }
  func.func @transform_0(%arg0: i32) -> (i32, i32, i32) {
    %c0_i32 = arith.constant 0 : i32
    %c0_i32_0 = arith.constant 0 : i32
    %c0_i32_1 = arith.constant 0 : i32
    return %arg0, %c0_i32, %c0_i32_0 : i32, i32, i32
  }
  func.func @transform_1(%arg0: i32) -> (i32, i32, i32) {
    %c0_i32 = arith.constant 0 : i32
    %c0_i32_0 = arith.constant 0 : i32
    %c0_i32_1 = arith.constant 0 : i32
    return %arg0, %c0_i32, %c0_i32_0 : i32, i32, i32
  }
  func.func @transform_2(%arg0: i32) -> (i32, i32, i32) {
    %c0_i32 = arith.constant 0 : i32
    %c0_i32_0 = arith.constant 0 : i32
    %c0_i32_1 = arith.constant 0 : i32
    return %arg0, %c0_i32, %c0_i32_0 : i32, i32, i32
  }
  func.func @transform_3(%arg0: i32) -> (i32, i32, i32) {
    %c0_i32 = arith.constant 0 : i32
    %c0_i32_0 = arith.constant 0 : i32
    %c0_i32_1 = arith.constant 0 : i32
    return %arg0, %c0_i32, %c0_i32_0 : i32, i32, i32
  }
}

</mosaic_0001>

<llo_original>
// kernel: tpu_custom_call.1
$region0: #{tpu_custom_call.1}
  #allocation0 [shape = 'u32[]', space=smem, size = 0x4, offset = 0x4, fixed_abs, tag = 'smem constant byte address 0x4 - core index']
  #allocation1 [shape = 'u32[144,128]{1,0:T(1,128)}', space=vmem, size = 0x12000, scoped, tag = 'internal scratch']
  %s0 = inlined_call_operand.vmem [shape: f32[1,128,4], index: 0, kind: input, shape index: {}]
  %s1 = inlined_call_operand.vmem [shape: f32[1,4,128], index: 1, kind: input, shape index: {}]
  %s2 = inlined_call_operand.vmem [shape: f32[1,128,8], index: 2, kind: input, shape index: {}]
  %s3 = inlined_call_operand.hbm [shape: f32[1,1,8], index: 3, kind: output, shape index: {}]
  %s4 = sld [smem:[#allocation0]]
  $region22: #{tpu_custom_call.1} parent=0
    _
  %s6 = ssub.s32 1, %s4
  %s7 = scalar_select 0, %s6, %s4
  $region1: #{tpu_custom_call.1} parent=0
    #allocation2 [shape = 'u8[512]{0}', space=vmem, size = 0x400, scoped, tag = 'output window, operand 0, single buffered']
    #allocation3 [shape = 's32[1]{0}', space=sflag, size = 0x4, scoped, tag = 'scoped memory for tpu_custom_call.1']
    %8 = vsyncpa [#allocation3], 0
    // Predicated region
    $region2: #{tpu_custom_call.1} parent=1 // pred_check
      _
    $region3: #{tpu_custom_call.1} parent=1 // pred_check_branch
      %10 = sbr.rel (0) target = $region5
    $region4: #{tpu_custom_call.1} parent=1 // pred_region
      _
    $region5: #{tpu_custom_call.1} parent=1 // pred_fallthru
      _
    // Predicated region
    $region6: #{tpu_custom_call.1} parent=1 // pred_check
      _
    $region7: #{tpu_custom_call.1} parent=1 // pred_check_branch
      %12 = sbr.rel (0) target = $region9
    $region8: #{tpu_custom_call.1} parent=1 // pred_region
      _
    $region9: #{tpu_custom_call.1} parent=1 // pred_fallthru
      _
    // Predicated region
    $region10: #{tpu_custom_call.1} parent=1 // pred_check
      _
    $region11: #{tpu_custom_call.1} parent=1 // pred_check_branch
      %14 = sbr.rel (0) target = $region13
    $region12: #{tpu_custom_call.1} parent=1 // pred_region
      _
    $region13: #{tpu_custom_call.1} parent=1 // pred_fallthru
      _
    %v15 = vld [vmem:[%s0] sm:$0xff]
    %v16 = vld [vmem:[%s0 + $0x8] sm:$0xff]
    %v17 = vld [vmem:[%s0 + $0x10] sm:$0xff]
    %v18 = vld [vmem:[%s0 + $0x18] sm:$0xff]
    %v19 = vld [vmem:[%s0 + $0x20] sm:$0xff]
    %v20 = vld [vmem:[%s0 + $0x28] sm:$0xff]
    %v21 = vld [vmem:[%s0 + $0x30] sm:$0xff]
    %v22 = vld [vmem:[%s0 + $0x38] sm:$0xff]
    %v23 = vld [vmem:[%s0 + $0x40] sm:$0xff]
    %v24 = vld [vmem:[%s0 + $0x48] sm:$0xff]
    %v25 = vld [vmem:[%s0 + $0x50] sm:$0xff]
    %v26 = vld [vmem:[%s0 + $0x58] sm:$0xff]
    %v27 = vld [vmem:[%s0 + $0x60] sm:$0xff]
    %v28 = vld [vmem:[%s0 + $0x68] sm:$0xff]
    %v29 = vld [vmem:[%s0 + $0x70] sm:$0xff]
    %v30 = vld [vmem:[%s0 + $0x78] sm:$0xff]
    %v31 = vld [vmem:[%s1] sm:$0xf]
    %v32 = vld [vmem:[%s2] sm:$0xff]
    %v33 = vld [vmem:[%s2 + $0x8] sm:$0xff]
    %v34 = vld [vmem:[%s2 + $0x10] sm:$0xff]
    %v35 = vld [vmem:[%s2 + $0x18] sm:$0xff]
    %v36 = vld [vmem:[%s2 + $0x20] sm:$0xff]
    %v37 = vld [vmem:[%s2 + $0x28] sm:$0xff]
    %v38 = vld [vmem:[%s2 + $0x30] sm:$0xff]
    %v39 = vld [vmem:[%s2 + $0x38] sm:$0xff]
    %v40 = vld [vmem:[%s2 + $0x40] sm:$0xff]
    %v41 = vld [vmem:[%s2 + $0x48] sm:$0xff]
    %v42 = vld [vmem:[%s2 + $0x50] sm:$0xff]
    %v43 = vld [vmem:[%s2 + $0x58] sm:$0xff]
    %v44 = vld [vmem:[%s2 + $0x60] sm:$0xff]
    %v45 = vld [vmem:[%s2 + $0x68] sm:$0xff]
    %v46 = vld [vmem:[%s2 + $0x70] sm:$0xff]
    %v47 = vld [vmem:[%s2 + $0x78] sm:$0xff]
    %vm48 = vcmask 31744
    %v50 = vsel %vm48, %v15, 0
    %v53 = vsel %vm48, %v16, 0
    %v56 = vsel %vm48, %v17, 0
    %v59 = vsel %vm48, %v18, 0
    %v62 = vsel %vm48, %v19, 0
    %v65 = vsel %vm48, %v20, 0
    %v68 = vsel %vm48, %v21, 0
    %v71 = vsel %vm48, %v22, 0
    %v74 = vsel %vm48, %v23, 0
    %v77 = vsel %vm48, %v24, 0
    %v80 = vsel %vm48, %v25, 0
    %v83 = vsel %vm48, %v26, 0
    %v86 = vsel %vm48, %v27, 0
    %v89 = vsel %vm48, %v28, 0
    %v92 = vsel %vm48, %v29, 0
    %v95 = vsel %vm48, %v30, 0
    %vm97 = vcmask 1043456
    %v99 = vsel %vm97, %v31, 0
    %101 = vmatprep.subr.mxu0 0.0
    %102 = vmatpush1.msra.mxu0 0.0
    %103 = vmatprep.subr.mxu0 0.0
    %104 = vmatpush1.msra.mxu0 0.0
    %105 = vmatprep.subr.mxu0 0.0
    %106 = vmatpush1.msra.mxu0 0.0
    %107 = vmatprep.subr.mxu0 0.0
    %108 = vmatpush1.msra.mxu0 0.0
    %109 = vmatprep.subr.mxu0 0.0
    %110 = vmatpush1.msra.mxu0 0.0
    %111 = vmatprep.subr.mxu0 0.0
    %112 = vmatpush1.msra.mxu0 0.0
    %113 = vmatprep.subr.mxu0 0.0
    %114 = vmatpush1.msra.mxu0 0.0
    %115 = vmatprep.subr.mxu0 0.0
    %116 = vmatpush1.msra.mxu0 0.0
    %117 = vmatprep.subr.mxu0 0.0
    %118 = vmatpush1.msra.mxu0 0.0
    %119 = vmatprep.subr.mxu0 0.0
    %120 = vmatpush1.msra.mxu0 0.0
    %121 = vmatprep.subr.mxu0 0.0
    %122 = vmatpush1.msra.mxu0 0.0
    %123 = vmatprep.subr.mxu0 0.0
    %124 = vmatpush1.msra.mxu0 0.0
    %125 = vmatprep.subr.mxu0 0.0
    %126 = vmatpush1.msra.mxu0 0.0
    %127 = vmatprep.subr.mxu0 0.0
    %128 = vmatpush1.msra.mxu0 0.0
    %129 = vmatprep.subr.mxu0 0.0
    %130 = vmatpush1.msra.mxu0 0.0
    %131 = vmatprep.subr.mxu0 0.0
    %v132 = vand.u32 %v99, 4294901760
    %133 = vmatpush1.msra.mxu0 %v132
    %134 = vmatprep.subr.mxu0 0.0
    %135 = vmatpush2.msra.mxu0 0.0
    %136 = vmatprep.subr.mxu0 0.0
    %137 = vmatpush2.msra.mxu0 0.0
    %138 = vmatprep.subr.mxu0 0.0
    %139 = vmatpush2.msra.mxu0 0.0
    %140 = vmatprep.subr.mxu0 0.0
    %141 = vmatpush2.msra.mxu0 0.0
    %142 = vmatprep.subr.mxu0 0.0
    %143 = vmatpush2.msra.mxu0 0.0
    %144 = vmatprep.subr.mxu0 0.0
    %145 = vmatpush2.msra.mxu0 0.0
    %146 = vmatprep.subr.mxu0 0.0
    %147 = vmatpush2.msra.mxu0 0.0
    %148 = vmatprep.subr.mxu0 0.0
    %149 = vmatpush2.msra.mxu0 0.0
    %150 = vmatprep.subr.mxu0 0.0
    %151 = vmatpush2.msra.mxu0 0.0
    %152 = vmatprep.subr.mxu0 0.0
    %153 = vmatpush2.msra.mxu0 0.0
    %154 = vmatprep.subr.mxu0 0.0
    %155 = vmatpush2.msra.mxu0 0.0
    %156 = vmatprep.subr.mxu0 0.0
    %157 = vmatpush2.msra.mxu0 0.0
    %158 = vmatprep.subr.mxu0 0.0
    %159 = vmatpush2.msra.mxu0 0.0
    %160 = vmatprep.subr.mxu0 0.0
    %161 = vmatpush2.msra.mxu0 0.0
    %162 = vmatprep.subr.mxu0 0.0
    %163 = vmatpush2.msra.mxu0 0.0
    %164 = vmatprep.subr.mxu0 0.0
    %165 = vmatpush2.msra.mxu0 0.0
    %166 = vmatprep.mubr.f32.mxu0 0.0
    %v167 = vand.u32 %v50, 4294901760
    %v168 = vsub.f32 %v50, %v167
    %v169 = vand.u32 %v168, 4294901760
    %v170 = vsub.f32 %v168, %v169
    %v171 = vand.u32 %v170, 4294901760
    %172 = vmatmul.mubr.f32.gmra.mxu0 %v171
    %v173 = vpop.f32.mrf.mxu0
    %v174 = vadd.f32 0.0, %v173
    %v175 = vpop.f32.mrf.mxu0
    %176 = vmatprep.mubr.f32.mxu0 0.0
    %v177 = vand.u32 %v53, 4294901760
    %v178 = vsub.f32 %v53, %v177
    %v179 = vand.u32 %v178, 4294901760
    %v180 = vsub.f32 %v178, %v179
    %v181 = vand.u32 %v180, 4294901760
    %182 = vmatmul.mubr.f32.gmra.mxu0 %v181
    %v183 = vpop.f32.mrf.mxu0
    %v184 = vadd.f32 0.0, %v183
    %v185 = vpop.f32.mrf.mxu0
    %186 = vmatprep.mubr.f32.mxu0 0.0
    %v187 = vand.u32 %v56, 4294901760
    %v188 = vsub.f32 %v56, %v187
    %v189 = vand.u32 %v188, 4294901760
    %v190 = vsub.f32 %v188, %v189
    %v191 = vand.u32 %v190, 4294901760
    %192 = vmatmul.mubr.f32.gmra.mxu0 %v191
    %v193 = vpop.f32.mrf.mxu0
    %v194 = vadd.f32 0.0, %v193
    %v195 = vpop.f32.mrf.mxu0
    %196 = vmatprep.mubr.f32.mxu0 0.0
    %v197 = vand.u32 %v59, 4294901760
    %v198 = vsub.f32 %v59, %v197
    %v199 = vand.u32 %v198, 4294901760
    %v200 = vsub.f32 %v198, %v199
    %v201 = vand.u32 %v200, 4294901760
    %202 = vmatmul.mubr.f32.gmra.mxu0 %v201
    %v203 = vpop.f32.mrf.mxu0
    %v204 = vadd.f32 0.0, %v203
    %v205 = vpop.f32.mrf.mxu0
    %206 = vmatprep.mubr.f32.mxu0 0.0
    %v207 = vand.u32 %v62, 4294901760
    %v208 = vsub.f32 %v62, %v207
    %v209 = vand.u32 %v208, 4294901760
    %v210 = vsub.f32 %v208, %v209
    %v211 = vand.u32 %v210, 4294901760
    %212 = vmatmul.mubr.f32.gmra.mxu0 %v211
    %v213 = vpop.f32.mrf.mxu0
    %v214 = vadd.f32 0.0, %v213
    %v215 = vpop.f32.mrf.mxu0
    %216 = vmatprep.mubr.f32.mxu0 0.0
    %v217 = vand.u32 %v65, 4294901760
    %v218 = vsub.f32 %v65, %v217
    %v219 = vand.u32 %v218, 4294901760
    %v220 = vsub.f32 %v218, %v219
    %v221 = vand.u32 %v220, 4294901760
    %222 = vmatmul.mubr.f32.gmra.mxu0 %v221
    %v223 = vpop.f32.mrf.mxu0
    %v224 = vadd.f32 0.0, %v223
    %v225 = vpop.f32.mrf.mxu0
    %226 = vmatprep.mubr.f32.mxu0 0.0
    %v227 = vand.u32 %v68, 4294901760
    %v228 = vsub.f32 %v68, %v227
    %v229 = vand.u32 %v228, 4294901760
    %v230 = vsub.f32 %v228, %v229
    %v231 = vand.u32 %v230, 4294901760
    %232 = vmatmul.mubr.f32.gmra.mxu0 %v231
    %v233 = vpop.f32.mrf.mxu0
    %v234 = vadd.f32 0.0, %v233
    %v235 = vpop.f32.mrf.mxu0
    %236 = vmatprep.mubr.f32.mxu0 0.0
    %v237 = vand.u32 %v71, 4294901760
    %v238 = vsub.f32 %v71, %v237
    %v239 = vand.u32 %v238, 4294901760
    %v240 = vsub.f32 %v238, %v239
    %v241 = vand.u32 %v240, 4294901760
    %242 = vmatmul.mubr.f32.gmra.mxu0 %v241
    %v243 = vpop.f32.mrf.mxu0
    %v244 = vadd.f32 0.0, %v243
    %v245 = vpop.f32.mrf.mxu0
    %246 = vmatprep.mubr.f32.mxu0 0.0
    %v247 = vand.u32 %v74, 4294901760
    %v248 = vsub.f32 %v74, %v247
    %v249 = vand.u32 %v248, 4294901760
    %v250 = vsub.f32 %v248, %v249
    %v251 = vand.u32 %v250, 4294901760
    %252 = vmatmul.mubr.f32.gmra.mxu0 %v251
    %v253 = vpop.f32.mrf.mxu0
    %v254 = vadd.f32 0.0, %v253
    %v255 = vpop.f32.mrf.mxu0
    %256 = vmatprep.mubr.f32.mxu0 0.0
    %v257 = vand.u32 %v77, 4294901760
    %v258 = vsub.f32 %v77, %v257
    %v259 = vand.u32 %v258, 4294901760
    %v260 = vsub.f32 %v258, %v259
    %v261 = vand.u32 %v260, 4294901760
    %262 = vmatmul.mubr.f32.gmra.mxu0 %v261
    %v263 = vpop.f32.mrf.mxu0
    %v264 = vadd.f32 0.0, %v263
    %v265 = vpop.f32.mrf.mxu0
    %266 = vmatprep.mubr.f32.mxu0 0.0
    %v267 = vand.u32 %v80, 4294901760
    %v268 = vsub.f32 %v80, %v267
    %v269 = vand.u32 %v268, 4294901760
    %v270 = vsub.f32 %v268, %v269
    %v271 = vand.u32 %v270, 4294901760
    %272 = vmatmul.mubr.f32.gmra.mxu0 %v271
    %v273 = vpop.f32.mrf.mxu0
    %v274 = vadd.f32 0.0, %v273
    %v275 = vpop.f32.mrf.mxu0
    %276 = vmatprep.mubr.f32.mxu0 0.0
    %v277 = vand.u32 %v83, 4294901760
    %v278 = vsub.f32 %v83, %v277
    %v279 = vand.u32 %v278, 4294901760
    %v280 = vsub.f32 %v278, %v279
    %v281 = vand.u32 %v280, 4294901760
    %282 = vmatmul.mubr.f32.gmra.mxu0 %v281
    %v283 = vpop.f32.mrf.mxu0
    %v284 = vadd.f32 0.0, %v283
    %v285 = vpop.f32.mrf.mxu0
    %286 = vmatprep.mubr.f32.mxu0 0.0
    %v287 = vand.u32 %v86, 4294901760
    %v288 = vsub.f32 %v86, %v287
    %v289 = vand.u32 %v288, 4294901760
    %v290 = vsub.f32 %v288, %v289
    %v291 = vand.u32 %v290, 4294901760
    %292 = vmatmul.mubr.f32.gmra.mxu0 %v291
    %v293 = vpop.f32.mrf.mxu0
    %v294 = vadd.f32 0.0, %v293
    %v295 = vpop.f32.mrf.mxu0
    %296 = vmatprep.mubr.f32.mxu0 0.0
    %v297 = vand.u32 %v89, 4294901760
    %v298 = vsub.f32 %v89, %v297
    %v299 = vand.u32 %v298, 4294901760
    %v300 = vsub.f32 %v298, %v299
    %v301 = vand.u32 %v300, 4294901760
    %302 = vmatmul.mubr.f32.gmra.mxu0 %v301
    %v303 = vpop.f32.mrf.mxu0
    %v304 = vadd.f32 0.0, %v303
    %v305 = vpop.f32.mrf.mxu0
    %306 = vmatprep.mubr.f32.mxu0 0.0
    %v307 = vand.u32 %v92, 4294901760
    %v308 = vsub.f32 %v92, %v307
    %v309 = vand.u32 %v308, 4294901760
    %v310 = vsub.f32 %v308, %v309
    %v311 = vand.u32 %v310, 4294901760
    %312 = vmatmul.mubr.f32.gmra.mxu0 %v311
    %v313 = vpop.f32.mrf.mxu0
    %v314 = vadd.f32 0.0, %v313
    %v315 = vpop.f32.mrf.mxu0
    %316 = vmatprep.mubr.f32.mxu0 0.0
    %v317 = vand.u32 %v95, 4294901760
    %v318 = vsub.f32 %v95, %v317
    %v319 = vand.u32 %v318, 4294901760
    %v320 = vsub.f32 %v318, %v319
    %v321 = vand.u32 %v320, 4294901760
    %322 = vmatmul.mubr.f32.gmra.mxu0 %v321
    %v323 = vpop.f32.mrf.mxu0
    %v324 = vadd.f32 0.0, %v323
    %v325 = vpop.f32.mrf.mxu0
    %326 = vdwg.mxu0
    %327 = vmatprep.subr.mxu0 0.0
    %328 = vmatpush1.msra.mxu0 0.0
    %329 = vmatprep.subr.mxu0 0.0
    %330 = vmatpush1.msra.mxu0 0.0
    %331 = vmatprep.subr.mxu0 0.0
    %332 = vmatpush1.msra.mxu0 0.0
    %333 = vmatprep.subr.mxu0 0.0
    %334 = vmatpush1.msra.mxu0 0.0
    %335 = vmatprep.subr.mxu0 0.0
    %336 = vmatpush1.msra.mxu0 0.0
    %337 = vmatprep.subr.mxu0 0.0
    %338 = vmatpush1.msra.mxu0 0.0
    %339 = vmatprep.subr.mxu0 0.0
    %340 = vmatpush1.msra.mxu0 0.0
    %341 = vmatprep.subr.mxu0 0.0
    %342 = vmatpush1.msra.mxu0 0.0
    %343 = vmatprep.subr.mxu0 0.0
    %344 = vmatpush1.msra.mxu0 0.0
    %345 = vmatprep.subr.mxu0 0.0
    %346 = vmatpush1.msra.mxu0 0.0
    %347 = vmatprep.subr.mxu0 0.0
    %348 = vmatpush1.msra.mxu0 0.0
    %349 = vmatprep.subr.mxu0 0.0
    %350 = vmatpush1.msra.mxu0 0.0
    %351 = vmatprep.subr.mxu0 0.0
    %352 = vmatpush1.msra.mxu0 0.0
    %353 = vmatprep.subr.mxu0 0.0
    %354 = vmatpush1.msra.mxu0 0.0
    %355 = vmatprep.subr.mxu0 0.0
    %356 = vmatpush1.msra.mxu0 0.0
    %357 = vmatprep.subr.mxu0 0.0
    %v358 = vand.u32 %v99, 4294901760
    %v359 = vsub.f32 %v99, %v358
    %v360 = vand.u32 %v359, 4294901760
    %v361 = vsub.f32 %v359, %v360
    %v362 = vand.u32 %v361, 4294901760
    %363 = vmatpush1.msra.mxu0 %v362
    %364 = vmatprep.subr.mxu0 0.0
    %365 = vmatpush2.msra.mxu0 0.0
    %366 = vmatprep.subr.mxu0 0.0
    %367 = vmatpush2.msra.mxu0 0.0
    %368 = vmatprep.subr.mxu0 0.0
    %369 = vmatpush2.msra.mxu0 0.0
    %370 = vmatprep.subr.mxu0 0.0
    %371 = vmatpush2.msra.mxu0 0.0
    %372 = vmatprep.subr.mxu0 0.0
    %373 = vmatpush2.msra.mxu0 0.0
    %374 = vmatprep.subr.mxu0 0.0
    %375 = vmatpush2.msra.mxu0 0.0
    %376 = vmatprep.subr.mxu0 0.0
    %377 = vmatpush2.msra.mxu0 0.0
    %378 = vmatprep.subr.mxu0 0.0
    %379 = vmatpush2.msra.mxu0 0.0
    %380 = vmatprep.subr.mxu0 0.0
    %381 = vmatpush2.msra.mxu0 0.0
    %382 = vmatprep.subr.mxu0 0.0
    %383 = vmatpush2.msra.mxu0 0.0
    %384 = vmatprep.subr.mxu0 0.0
    %385 = vmatpush2.msra.mxu0 0.0
    %386 = vmatprep.subr.mxu0 0.0
    %387 = vmatpush2.msra.mxu0 0.0
    %388 = vmatprep.subr.mxu0 0.0
    %389 = vmatpush2.msra.mxu0 0.0
    %390 = vmatprep.subr.mxu0 0.0
    %391 = vmatpush2.msra.mxu0 0.0
    %392 = vmatprep.subr.mxu0 0.0
    %393 = vmatpush2.msra.mxu0 0.0
    %394 = vmatprep.subr.mxu0 0.0
    %395 = vmatpush2.msra.mxu0 0.0
    %396 = vmatprep.mubr.f32.mxu0 0.0
    %v397 = vand.u32 %v50, 4294901760
    %398 = vmatmul.mubr.f32.gmra.mxu0 %v397
    %v399 = vpop.f32.mrf.mxu0
    %v400 = vadd.f32 %v174, %v399
    %v401 = vpop.f32.mrf.mxu0
    %402 = vmatprep.mubr.f32.mxu0 0.0
    %v403 = vand.u32 %v53, 4294901760
    %404 = vmatmul.mubr.f32.gmra.mxu0 %v403
    %v405 = vpop.f32.mrf.mxu0
    %v406 = vadd.f32 %v184, %v405
    %v407 = vpop.f32.mrf.mxu0
    %408 = vmatprep.mubr.f32.mxu0 0.0
    %v409 = vand.u32 %v56, 4294901760
    %410 = vmatmul.mubr.f32.gmra.mxu0 %v409
    %v411 = vpop.f32.mrf.mxu0
    %v412 = vadd.f32 %v194, %v411
    %v413 = vpop.f32.mrf.mxu0
    %414 = vmatprep.mubr.f32.mxu0 0.0
    %v415 = vand.u32 %v59, 4294901760
    %416 = vmatmul.mubr.f32.gmra.mxu0 %v415
    %v417 = vpop.f32.mrf.mxu0
    %v418 = vadd.f32 %v204, %v417
    %v419 = vpop.f32.mrf.mxu0
    %420 = vmatprep.mubr.f32.mxu0 0.0
    %v421 = vand.u32 %v62, 4294901760
    %422 = vmatmul.mubr.f32.gmra.mxu0 %v421
    %v423 = vpop.f32.mrf.mxu0
    %v424 = vadd.f32 %v214, %v423
    %v425 = vpop.f32.mrf.mxu0
    %426 = vmatprep.mubr.f32.mxu0 0.0
    %v427 = vand.u32 %v65, 4294901760
    %428 = vmatmul.mubr.f32.gmra.mxu0 %v427
    %v429 = vpop.f32.mrf.mxu0
    %v430 = vadd.f32 %v224, %v429
    %v431 = vpop.f32.mrf.mxu0
    %432 = vmatprep.mubr.f32.mxu0 0.0
    %v433 = vand.u32 %v68, 4294901760
    %434 = vmatmul.mubr.f32.gmra.mxu0 %v433
    %v435 = vpop.f32.mrf.mxu0
    %v436 = vadd.f32 %v234, %v435
    %v437 = vpop.f32.mrf.mxu0
    %438 = vmatprep.mubr.f32.mxu0 0.0
    %v439 = vand.u32 %v71, 4294901760
    %440 = vmatmul.mubr.f32.gmra.mxu0 %v439
    %v441 = vpop.f32.mrf.mxu0
    %v442 = vadd.f32 %v244, %v441
    %v443 = vpop.f32.mrf.mxu0
    %444 = vmatprep.mubr.f32.mxu0 0.0
    %v445 = vand.u32 %v74, 4294901760
    %446 = vmatmul.mubr.f32.gmra.mxu0 %v445
    %v447 = vpop.f32.mrf.mxu0
    %v448 = vadd.f32 %v254, %v447
    %v449 = vpop.f32.mrf.mxu0
    %450 = vmatprep.mubr.f32.mxu0 0.0
    %v451 = vand.u32 %v77, 4294901760
    %452 = vmatmul.mubr.f32.gmra.mxu0 %v451
    %v453 = vpop.f32.mrf.mxu0
    %v454 = vadd.f32 %v264, %v453
    %v455 = vpop.f32.mrf.mxu0
    %456 = vmatprep.mubr.f32.mxu0 0.0
    %v457 = vand.u32 %v80, 4294901760
    %458 = vmatmul.mubr.f32.gmra.mxu0 %v457
    %v459 = vpop.f32.mrf.mxu0
    %v460 = vadd.f32 %v274, %v459
    %v461 = vpop.f32.mrf.mxu0
    %462 = vmatprep.mubr.f32.mxu0 0.0
    %v463 = vand.u32 %v83, 4294901760
    %464 = vmatmul.mubr.f32.gmra.mxu0 %v463
    %v465 = vpop.f32.mrf.mxu0
    %v466 = vadd.f32 %v284, %v465
    %v467 = vpop.f32.mrf.mxu0
    %468 = vmatprep.mubr.f32.mxu0 0.0
    %v469 = vand.u32 %v86, 4294901760
    %470 = vmatmul.mubr.f32.gmra.mxu0 %v469
    %v471 = vpop.f32.mrf.mxu0
    %v472 = vadd.f32 %v294, %v471
    %v473 = vpop.f32.mrf.mxu0
    %474 = vmatprep.mubr.f32.mxu0 0.0
    %v475 = vand.u32 %v89, 4294901760
    %476 = vmatmul.mubr.f32.gmra.mxu0 %v475
    %v477 = vpop.f32.mrf.mxu0
    %v478 = vadd.f32 %v304, %v477
    %v479 = vpop.f32.mrf.mxu0
    %480 = vmatprep.mubr.f32.mxu0 0.0
    %v481 = vand.u32 %v92, 4294901760
    %482 = vmatmul.mubr.f32.gmra.mxu0 %v481
    %v483 = vpop.f32.mrf.mxu0
    %v484 = vadd.f32 %v314, %v483
    %v485 = vpop.f32.mrf.mxu0
    %486 = vmatprep.mubr.f32.mxu0 0.0
    %v487 = vand.u32 %v95, 4294901760
    %488 = vmatmul.mubr.f32.gmra.mxu0 %v487
    %v489 = vpop.f32.mrf.mxu0
    %v490 = vadd.f32 %v324, %v489
    %v491 = vpop.f32.mrf.mxu0
    %492 = vdwg.mxu0
    %493 = vmatprep.subr.mxu0 0.0
    %494 = vmatpush1.msra.mxu0 0.0
    %495 = vmatprep.subr.mxu0 0.0
    %496 = vmatpush1.msra.mxu0 0.0
    %497 = vmatprep.subr.mxu0 0.0
    %498 = vmatpush1.msra.mxu0 0.0
    %499 = vmatprep.subr.mxu0 0.0
    %500 = vmatpush1.msra.mxu0 0.0
    %501 = vmatprep.subr.mxu0 0.0
    %502 = vmatpush1.msra.mxu0 0.0
    %503 = vmatprep.subr.mxu0 0.0
    %504 = vmatpush1.msra.mxu0 0.0
    %505 = vmatprep.subr.mxu0 0.0
    %506 = vmatpush1.msra.mxu0 0.0
    %507 = vmatprep.subr.mxu0 0.0
    %508 = vmatpush1.msra.mxu0 0.0
    %509 = vmatprep.subr.mxu0 0.0
    %510 = vmatpush1.msra.mxu0 0.0
    %511 = vmatprep.subr.mxu0 0.0
    %512 = vmatpush1.msra.mxu0 0.0
    %513 = vmatprep.subr.mxu0 0.0
    %514 = vmatpush1.msra.mxu0 0.0
    %515 = vmatprep.subr.mxu0 0.0
    %516 = vmatpush1.msra.mxu0 0.0
    %517 = vmatprep.subr.mxu0 0.0
    %518 = vmatpush1.msra.mxu0 0.0
    %519 = vmatprep.subr.mxu0 0.0
    %520 = vmatpush1.msra.mxu0 0.0
    %521 = vmatprep.subr.mxu0 0.0
    %522 = vmatpush1.msra.mxu0 0.0
    %523 = vmatprep.subr.mxu0 0.0
    %v524 = vand.u32 %v99, 4294901760
    %v525 = vsub.f32 %v99, %v524
    %526 = vmatpush1.msra.mxu0 %v525
    %527 = vmatprep.subr.mxu0 0.0
    %528 = vmatpush2.msra.mxu0 0.0
    %529 = vmatprep.subr.mxu0 0.0
    %530 = vmatpush2.msra.mxu0 0.0
    %531 = vmatprep.subr.mxu0 0.0
    %532 = vmatpush2.msra.mxu0 0.0
    %533 = vmatprep.subr.mxu0 0.0
    %534 = vmatpush2.msra.mxu0 0.0
    %535 = vmatprep.subr.mxu0 0.0
    %536 = vmatpush2.msra.mxu0 0.0
    %537 = vmatprep.subr.mxu0 0.0
    %538 = vmatpush2.msra.mxu0 0.0
    %539 = vmatprep.subr.mxu0 0.0
    %540 = vmatpush2.msra.mxu0 0.0
    %541 = vmatprep.subr.mxu0 0.0
    %542 = vmatpush2.msra.mxu0 0.0
    %543 = vmatprep.subr.mxu0 0.0
    %544 = vmatpush2.msra.mxu0 0.0
    %545 = vmatprep.subr.mxu0 0.0
    %546 = vmatpush2.msra.mxu0 0.0
    %547 = vmatprep.subr.mxu0 0.0
    %548 = vmatpush2.msra.mxu0 0.0
    %549 = vmatprep.subr.mxu0 0.0
    %550 = vmatpush2.msra.mxu0 0.0
    %551 = vmatprep.subr.mxu0 0.0
    %552 = vmatpush2.msra.mxu0 0.0
    %553 = vmatprep.subr.mxu0 0.0
    %554 = vmatpush2.msra.mxu0 0.0
    %555 = vmatprep.subr.mxu0 0.0
    %556 = vmatpush2.msra.mxu0 0.0
    %557 = vmatprep.subr.mxu0 0.0
    %558 = vmatpush2.msra.mxu0 0.0
    %559 = vmatprep.mubr.f32.mxu0 0.0
    %v560 = vand.u32 %v50, 4294901760
    %v561 = vsub.f32 %v50, %v560
    %562 = vmatmul.mubr.f32.gmra.mxu0 %v561
    %v563 = vpop.f32.mrf.mxu0
    %v564 = vadd.f32 %v400, %v563
    %v565 = vpop.f32.mrf.mxu0
    %566 = vmatprep.mubr.f32.mxu0 0.0
    %v567 = vand.u32 %v53, 4294901760
    %v568 = vsub.f32 %v53, %v567
    %569 = vmatmul.mubr.f32.gmra.mxu0 %v568
    %v570 = vpop.f32.mrf.mxu0
    %v571 = vadd.f32 %v406, %v570
    %v572 = vpop.f32.mrf.mxu0
    %573 = vmatprep.mubr.f32.mxu0 0.0
    %v574 = vand.u32 %v56, 4294901760
    %v575 = vsub.f32 %v56, %v574
    %576 = vmatmul.mubr.f32.gmra.mxu0 %v575
    %v577 = vpop.f32.mrf.mxu0
    %v578 = vadd.f32 %v412, %v577
    %v579 = vpop.f32.mrf.mxu0
    %580 = vmatprep.mubr.f32.mxu0 0.0
    %v581 = vand.u32 %v59, 4294901760
    %v582 = vsub.f32 %v59, %v581
    %583 = vmatmul.mubr.f32.gmra.mxu0 %v582
    %v584 = vpop.f32.mrf.mxu0
    %v585 = vadd.f32 %v418, %v584
    %v586 = vpop.f32.mrf.mxu0
    %587 = vmatprep.mubr.f32.mxu0 0.0
    %v588 = vand.u32 %v62, 4294901760
    %v589 = vsub.f32 %v62, %v588
    %590 = vmatmul.mubr.f32.gmra.mxu0 %v589
    %v591 = vpop.f32.mrf.mxu0
    %v592 = vadd.f32 %v424, %v591
    %v593 = vpop.f32.mrf.mxu0
    %594 = vmatprep.mubr.f32.mxu0 0.0
    %v595 = vand.u32 %v65, 4294901760
    %v596 = vsub.f32 %v65, %v595
    %597 = vmatmul.mubr.f32.gmra.mxu0 %v596
    %v598 = vpop.f32.mrf.mxu0
    %v599 = vadd.f32 %v430, %v598
    %v600 = vpop.f32.mrf.mxu0
    %601 = vmatprep.mubr.f32.mxu0 0.0
    %v602 = vand.u32 %v68, 4294901760
    %v603 = vsub.f32 %v68, %v602
    %604 = vmatmul.mubr.f32.gmra.mxu0 %v603
    %v605 = vpop.f32.mrf.mxu0
    %v606 = vadd.f32 %v436, %v605
    %v607 = vpop.f32.mrf.mxu0
    %608 = vmatprep.mubr.f32.mxu0 0.0
    %v609 = vand.u32 %v71, 4294901760
    %v610 = vsub.f32 %v71, %v609
    %611 = vmatmul.mubr.f32.gmra.mxu0 %v610
    %v612 = vpop.f32.mrf.mxu0
    %v613 = vadd.f32 %v442, %v612
    %v614 = vpop.f32.mrf.mxu0
    %615 = vmatprep.mubr.f32.mxu0 0.0
    %v616 = vand.u32 %v74, 4294901760
    %v617 = vsub.f32 %v74, %v616
    %618 = vmatmul.mubr.f32.gmra.mxu0 %v617
    %v619 = vpop.f32.mrf.mxu0
    %v620 = vadd.f32 %v448, %v619
    %v621 = vpop.f32.mrf.mxu0
    %622 = vmatprep.mubr.f32.mxu0 0.0
    %v623 = vand.u32 %v77, 4294901760
    %v624 = vsub.f32 %v77, %v623
    %625 = vmatmul.mubr.f32.gmra.mxu0 %v624
    %v626 = vpop.f32.mrf.mxu0
    %v627 = vadd.f32 %v454, %v626
    %v628 = vpop.f32.mrf.mxu0
    %629 = vmatprep.mubr.f32.mxu0 0.0
    %v630 = vand.u32 %v80, 4294901760
    %v631 = vsub.f32 %v80, %v630
    %632 = vmatmul.mubr.f32.gmra.mxu0 %v631
    %v633 = vpop.f32.mrf.mxu0
    %v634 = vadd.f32 %v460, %v633
    %v635 = vpop.f32.mrf.mxu0
    %636 = vmatprep.mubr.f32.mxu0 0.0
    %v637 = vand.u32 %v83, 4294901760
    %v638 = vsub.f32 %v83, %v637
    %639 = vmatmul.mubr.f32.gmra.mxu0 %v638
    %v640 = vpop.f32.mrf.mxu0
    %v641 = vadd.f32 %v466, %v640
    %v642 = vpop.f32.mrf.mxu0
    %643 = vmatprep.mubr.f32.mxu0 0.0
    %v644 = vand.u32 %v86, 4294901760
    %v645 = vsub.f32 %v86, %v644
    %646 = vmatmul.mubr.f32.gmra.mxu0 %v645
    %v647 = vpop.f32.mrf.mxu0
    %v648 = vadd.f32 %v472, %v647
    %v649 = vpop.f32.mrf.mxu0
    %650 = vmatprep.mubr.f32.mxu0 0.0
    %v651 = vand.u32 %v89, 4294901760
    %v652 = vsub.f32 %v89, %v651
    %653 = vmatmul.mubr.f32.gmra.mxu0 %v652
    %v654 = vpop.f32.mrf.mxu0
    %v655 = vadd.f32 %v478, %v654
    %v656 = vpop.f32.mrf.mxu0
    %657 = vmatprep.mubr.f32.mxu0 0.0
    %v658 = vand.u32 %v92, 4294901760
    %v659 = vsub.f32 %v92, %v658
    %660 = vmatmul.mubr.f32.gmra.mxu0 %v659
    %v661 = vpop.f32.mrf.mxu0
    %v662 = vadd.f32 %v484, %v661
    %v663 = vpop.f32.mrf.mxu0
    %664 = vmatprep.mubr.f32.mxu0 0.0
    %v665 = vand.u32 %v95, 4294901760
    %v666 = vsub.f32 %v95, %v665
    %667 = vmatmul.mubr.f32.gmra.mxu0 %v666
    %v668 = vpop.f32.mrf.mxu0
    %v669 = vadd.f32 %v490, %v668
    %v670 = vpop.f32.mrf.mxu0
    %671 = vdwg.mxu0
    %672 = vmatprep.subr.mxu0 0.0
    %673 = vmatpush1.msra.mxu0 0.0
    %674 = vmatprep.subr.mxu0 0.0
    %675 = vmatpush1.msra.mxu0 0.0
    %676 = vmatprep.subr.mxu0 0.0
    %677 = vmatpush1.msra.mxu0 0.0
    %678 = vmatprep.subr.mxu0 0.0
    %679 = vmatpush1.msra.mxu0 0.0
    %680 = vmatprep.subr.mxu0 0.0
    %681 = vmatpush1.msra.mxu0 0.0
    %682 = vmatprep.subr.mxu0 0.0
    %683 = vmatpush1.msra.mxu0 0.0
    %684 = vmatprep.subr.mxu0 0.0
    %685 = vmatpush1.msra.mxu0 0.0
    %686 = vmatprep.subr.mxu0 0.0
    %687 = vmatpush1.msra.mxu0 0.0
    %688 = vmatprep.subr.mxu0 0.0
    %689 = vmatpush1.msra.mxu0 0.0
    %690 = vmatprep.subr.mxu0 0.0
    %691 = vmatpush1.msra.mxu0 0.0
    %692 = vmatprep.subr.mxu0 0.0
    %693 = vmatpush1.msra.mxu0 0.0
    %694 = vmatprep.subr.mxu0 0.0
    %695 = vmatpush1.msra.mxu0 0.0
    %696 = vmatprep.subr.mxu0 0.0
    %697 = vmatpush1.msra.mxu0 0.0
    %698 = vmatprep.subr.mxu0 0.0
    %699 = vmatpush1.msra.mxu0 0.0
    %700 = vmatprep.subr.mxu0 0.0
    %701 = vmatpush1.msra.mxu0 0.0
    %702 = vmatprep.subr.mxu0 0.0
    %v703 = vand.u32 %v99, 4294901760
    %704 = vmatpush1.msra.mxu0 %v703
    %705 = vmatprep.subr.mxu0 0.0
    %706 = vmatpush2.msra.mxu0 0.0
    %707 = vmatprep.subr.mxu0 0.0
    %708 = vmatpush2.msra.mxu0 0.0
    %709 = vmatprep.subr.mxu0 0.0
    %710 = vmatpush2.msra.mxu0 0.0
    %711 = vmatprep.subr.mxu0 0.0
    %712 = vmatpush2.msra.mxu0 0.0
    %713 = vmatprep.subr.mxu0 0.0
    %714 = vmatpush2.msra.mxu0 0.0
    %715 = vmatprep.subr.mxu0 0.0
    %716 = vmatpush2.msra.mxu0 0.0
    %717 = vmatprep.subr.mxu0 0.0
    %718 = vmatpush2.msra.mxu0 0.0
    %719 = vmatprep.subr.mxu0 0.0
    %720 = vmatpush2.msra.mxu0 0.0
    %721 = vmatprep.subr.mxu0 0.0
    %722 = vmatpush2.msra.mxu0 0.0
    %723 = vmatprep.subr.mxu0 0.0
    %724 = vmatpush2.msra.mxu0 0.0
    %725 = vmatprep.subr.mxu0 0.0
    %726 = vmatpush2.msra.mxu0 0.0
    %727 = vmatprep.subr.mxu0 0.0
    %728 = vmatpush2.msra.mxu0 0.0
    %729 = vmatprep.subr.mxu0 0.0
    %730 = vmatpush2.msra.mxu0 0.0
    %731 = vmatprep.subr.mxu0 0.0
    %732 = vmatpush2.msra.mxu0 0.0
    %733 = vmatprep.subr.mxu0 0.0
    %734 = vmatpush2.msra.mxu0 0.0
    %735 = vmatprep.subr.mxu0 0.0
    %736 = vmatpush2.msra.mxu0 0.0
    %737 = vmatprep.mubr.f32.mxu0 0.0
    %v738 = vand.u32 %v50, 4294901760
    %v739 = vsub.f32 %v50, %v738
    %v740 = vand.u32 %v739, 4294901760
    %741 = vmatmul.mubr.f32.gmra.mxu0 %v740
    %v742 = vpop.f32.mrf.mxu0
    %v743 = vadd.f32 %v564, %v742
    %v744 = vpop.f32.mrf.mxu0
    %745 = vmatprep.mubr.f32.mxu0 0.0
    %v746 = vand.u32 %v53, 4294901760
    %v747 = vsub.f32 %v53, %v746
    %v748 = vand.u32 %v747, 4294901760
    %749 = vmatmul.mubr.f32.gmra.mxu0 %v748
    %v750 = vpop.f32.mrf.mxu0
    %v751 = vadd.f32 %v571, %v750
    %v752 = vpop.f32.mrf.mxu0
    %753 = vmatprep.mubr.f32.mxu0 0.0
    %v754 = vand.u32 %v56, 4294901760
    %v755 = vsub.f32 %v56, %v754
    %v756 = vand.u32 %v755, 4294901760
    %757 = vmatmul.mubr.f32.gmra.mxu0 %v756
    %v758 = vpop.f32.mrf.mxu0
    %v759 = vadd.f32 %v578, %v758
    %v760 = vpop.f32.mrf.mxu0
    %761 = vmatprep.mubr.f32.mxu0 0.0
    %v762 = vand.u32 %v59, 4294901760
    %v763 = vsub.f32 %v59, %v762
    %v764 = vand.u32 %v763, 4294901760
    %765 = vmatmul.mubr.f32.gmra.mxu0 %v764
    %v766 = vpop.f32.mrf.mxu0
    %v767 = vadd.f32 %v585, %v766
    %v768 = vpop.f32.mrf.mxu0
    %769 = vmatprep.mubr.f32.mxu0 0.0
    %v770 = vand.u32 %v62, 4294901760
    %v771 = vsub.f32 %v62, %v770
    %v772 = vand.u32 %v771, 4294901760
    %773 = vmatmul.mubr.f32.gmra.mxu0 %v772
    %v774 = vpop.f32.mrf.mxu0
    %v775 = vadd.f32 %v592, %v774
    %v776 = vpop.f32.mrf.mxu0
    %777 = vmatprep.mubr.f32.mxu0 0.0
    %v778 = vand.u32 %v65, 4294901760
    %v779 = vsub.f32 %v65, %v778
    %v780 = vand.u32 %v779, 4294901760
    %781 = vmatmul.mubr.f32.gmra.mxu0 %v780
    %v782 = vpop.f32.mrf.mxu0
    %v783 = vadd.f32 %v599, %v782
    %v784 = vpop.f32.mrf.mxu0
    %785 = vmatprep.mubr.f32.mxu0 0.0
    %v786 = vand.u32 %v68, 4294901760
    %v787 = vsub.f32 %v68, %v786
    %v788 = vand.u32 %v787, 4294901760
    %789 = vmatmul.mubr.f32.gmra.mxu0 %v788
    %v790 = vpop.f32.mrf.mxu0
    %v791 = vadd.f32 %v606, %v790
    %v792 = vpop.f32.mrf.mxu0
    %793 = vmatprep.mubr.f32.mxu0 0.0
    %v794 = vand.u32 %v71, 4294901760
    %v795 = vsub.f32 %v71, %v794
    %v796 = vand.u32 %v795, 4294901760
    %797 = vmatmul.mubr.f32.gmra.mxu0 %v796
    %v798 = vpop.f32.mrf.mxu0
    %v799 = vadd.f32 %v613, %v798
    %v800 = vpop.f32.mrf.mxu0
    %801 = vmatprep.mubr.f32.mxu0 0.0
    %v802 = vand.u32 %v74, 4294901760
    %v803 = vsub.f32 %v74, %v802
    %v804 = vand.u32 %v803, 4294901760
    %805 = vmatmul.mubr.f32.gmra.mxu0 %v804
    %v806 = vpop.f32.mrf.mxu0
    %v807 = vadd.f32 %v620, %v806
    %v808 = vpop.f32.mrf.mxu0
    %809 = vmatprep.mubr.f32.mxu0 0.0
    %v810 = vand.u32 %v77, 4294901760
    %v811 = vsub.f32 %v77, %v810
    %v812 = vand.u32 %v811, 4294901760
    %813 = vmatmul.mubr.f32.gmra.mxu0 %v812
    %v814 = vpop.f32.mrf.mxu0
    %v815 = vadd.f32 %v627, %v814
    %v816 = vpop.f32.mrf.mxu0
    %817 = vmatprep.mubr.f32.mxu0 0.0
    %v818 = vand.u32 %v80, 4294901760
    %v819 = vsub.f32 %v80, %v818
    %v820 = vand.u32 %v819, 4294901760
    %821 = vmatmul.mubr.f32.gmra.mxu0 %v820
    %v822 = vpop.f32.mrf.mxu0
    %v823 = vadd.f32 %v634, %v822
    %v824 = vpop.f32.mrf.mxu0
    %825 = vmatprep.mubr.f32.mxu0 0.0
    %v826 = vand.u32 %v83, 4294901760
    %v827 = vsub.f32 %v83, %v826
    %v828 = vand.u32 %v827, 4294901760
    %829 = vmatmul.mubr.f32.gmra.mxu0 %v828
    %v830 = vpop.f32.mrf.mxu0
    %v831 = vadd.f32 %v641, %v830
    %v832 = vpop.f32.mrf.mxu0
    %833 = vmatprep.mubr.f32.mxu0 0.0
    %v834 = vand.u32 %v86, 4294901760
    %v835 = vsub.f32 %v86, %v834
    %v836 = vand.u32 %v835, 4294901760
    %837 = vmatmul.mubr.f32.gmra.mxu0 %v836
    %v838 = vpop.f32.mrf.mxu0
    %v839 = vadd.f32 %v648, %v838
    %v840 = vpop.f32.mrf.mxu0
    %841 = vmatprep.mubr.f32.mxu0 0.0
    %v842 = vand.u32 %v89, 4294901760
    %v843 = vsub.f32 %v89, %v842
    %v844 = vand.u32 %v843, 4294901760
    %845 = vmatmul.mubr.f32.gmra.mxu0 %v844
    %v846 = vpop.f32.mrf.mxu0
    %v847 = vadd.f32 %v655, %v846
    %v848 = vpop.f32.mrf.mxu0
    %849 = vmatprep.mubr.f32.mxu0 0.0
    %v850 = vand.u32 %v92, 4294901760
    %v851 = vsub.f32 %v92, %v850
    %v852 = vand.u32 %v851, 4294901760
    %853 = vmatmul.mubr.f32.gmra.mxu0 %v852
    %v854 = vpop.f32.mrf.mxu0
    %v855 = vadd.f32 %v662, %v854
    %v856 = vpop.f32.mrf.mxu0
    %857 = vmatprep.mubr.f32.mxu0 0.0
    %v858 = vand.u32 %v95, 4294901760
    %v859 = vsub.f32 %v95, %v858
    %v860 = vand.u32 %v859, 4294901760
    %861 = vmatmul.mubr.f32.gmra.mxu0 %v860
    %v862 = vpop.f32.mrf.mxu0
    %v863 = vadd.f32 %v669, %v862
    %v864 = vpop.f32.mrf.mxu0
    %865 = vdwg.mxu0
    %866 = vmatprep.subr.mxu0 0.0
    %867 = vmatpush1.msra.mxu0 0.0
    %868 = vmatprep.subr.mxu0 0.0
    %869 = vmatpush1.msra.mxu0 0.0
    %870 = vmatprep.subr.mxu0 0.0
    %871 = vmatpush1.msra.mxu0 0.0
    %872 = vmatprep.subr.mxu0 0.0
    %873 = vmatpush1.msra.mxu0 0.0
    %874 = vmatprep.subr.mxu0 0.0
    %875 = vmatpush1.msra.mxu0 0.0
    %876 = vmatprep.subr.mxu0 0.0
    %877 = vmatpush1.msra.mxu0 0.0
    %878 = vmatprep.subr.mxu0 0.0
    %879 = vmatpush1.msra.mxu0 0.0
    %880 = vmatprep.subr.mxu0 0.0
    %881 = vmatpush1.msra.mxu0 0.0
    %882 = vmatprep.subr.mxu0 0.0
    %883 = vmatpush1.msra.mxu0 0.0
    %884 = vmatprep.subr.mxu0 0.0
    %885 = vmatpush1.msra.mxu0 0.0
    %886 = vmatprep.subr.mxu0 0.0
    %887 = vmatpush1.msra.mxu0 0.0
    %888 = vmatprep.subr.mxu0 0.0
    %889 = vmatpush1.msra.mxu0 0.0
    %890 = vmatprep.subr.mxu0 0.0
    %891 = vmatpush1.msra.mxu0 0.0
    %892 = vmatprep.subr.mxu0 0.0
    %893 = vmatpush1.msra.mxu0 0.0
    %894 = vmatprep.subr.mxu0 0.0
    %895 = vmatpush1.msra.mxu0 0.0
    %896 = vmatprep.subr.mxu0 0.0
    %v897 = vand.u32 %v99, 4294901760
    %v898 = vsub.f32 %v99, %v897
    %v899 = vand.u32 %v898, 4294901760
    %900 = vmatpush1.msra.mxu0 %v899
    %901 = vmatprep.subr.mxu0 0.0
    %902 = vmatpush2.msra.mxu0 0.0
    %903 = vmatprep.subr.mxu0 0.0
    %904 = vmatpush2.msra.mxu0 0.0
    %905 = vmatprep.subr.mxu0 0.0
    %906 = vmatpush2.msra.mxu0 0.0
    %907 = vmatprep.subr.mxu0 0.0
    %908 = vmatpush2.msra.mxu0 0.0
    %909 = vmatprep.subr.mxu0 0.0
    %910 = vmatpush2.msra.mxu0 0.0
    %911 = vmatprep.subr.mxu0 0.0
    %912 = vmatpush2.msra.mxu0 0.0
    %913 = vmatprep.subr.mxu0 0.0
    %914 = vmatpush2.msra.mxu0 0.0
    %915 = vmatprep.subr.mxu0 0.0
    %916 = vmatpush2.msra.mxu0 0.0
    %917 = vmatprep.subr.mxu0 0.0
    %918 = vmatpush2.msra.mxu0 0.0
    %919 = vmatprep.subr.mxu0 0.0
    %920 = vmatpush2.msra.mxu0 0.0
    %921 = vmatprep.subr.mxu0 0.0
    %922 = vmatpush2.msra.mxu0 0.0
    %923 = vmatprep.subr.mxu0 0.0
    %924 = vmatpush2.msra.mxu0 0.0
    %925 = vmatprep.subr.mxu0 0.0
    %926 = vmatpush2.msra.mxu0 0.0
    %927 = vmatprep.subr.mxu0 0.0
    %928 = vmatpush2.msra.mxu0 0.0
    %929 = vmatprep.subr.mxu0 0.0
    %930 = vmatpush2.msra.mxu0 0.0
    %931 = vmatprep.subr.mxu0 0.0
    %932 = vmatpush2.msra.mxu0 0.0
    %933 = vmatprep.mubr.f32.mxu0 0.0
    %v934 = vand.u32 %v50, 4294901760
    %935 = vmatmul.mubr.f32.gmra.mxu0 %v934
    %v936 = vpop.f32.mrf.mxu0
    %v937 = vadd.f32 %v743, %v936
    %v938 = vpop.f32.mrf.mxu0
    %939 = vmatprep.mubr.f32.mxu0 0.0
    %v940 = vand.u32 %v53, 4294901760
    %941 = vmatmul.mubr.f32.gmra.mxu0 %v940
    %v942 = vpop.f32.mrf.mxu0
    %v943 = vadd.f32 %v751, %v942
    %v944 = vpop.f32.mrf.mxu0
    %945 = vmatprep.mubr.f32.mxu0 0.0
    %v946 = vand.u32 %v56, 4294901760
    %947 = vmatmul.mubr.f32.gmra.mxu0 %v946
    %v948 = vpop.f32.mrf.mxu0
    %v949 = vadd.f32 %v759, %v948
    %v950 = vpop.f32.mrf.mxu0
    %951 = vmatprep.mubr.f32.mxu0 0.0
    %v952 = vand.u32 %v59, 4294901760
    %953 = vmatmul.mubr.f32.gmra.mxu0 %v952
    %v954 = vpop.f32.mrf.mxu0
    %v955 = vadd.f32 %v767, %v954
    %v956 = vpop.f32.mrf.mxu0
    %957 = vmatprep.mubr.f32.mxu0 0.0
    %v958 = vand.u32 %v62, 4294901760
    %959 = vmatmul.mubr.f32.gmra.mxu0 %v958
    %v960 = vpop.f32.mrf.mxu0
    %v961 = vadd.f32 %v775, %v960
    %v962 = vpop.f32.mrf.mxu0
    %963 = vmatprep.mubr.f32.mxu0 0.0
    %v964 = vand.u32 %v65, 4294901760
    %965 = vmatmul.mubr.f32.gmra.mxu0 %v964
    %v966 = vpop.f32.mrf.mxu0
    %v967 = vadd.f32 %v783, %v966
    %v968 = vpop.f32.mrf.mxu0
    %969 = vmatprep.mubr.f32.mxu0 0.0
    %v970 = vand.u32 %v68, 4294901760
    %971 = vmatmul.mubr.f32.gmra.mxu0 %v970
    %v972 = vpop.f32.mrf.mxu0
    %v973 = vadd.f32 %v791, %v972
    %v974 = vpop.f32.mrf.mxu0
    %975 = vmatprep.mubr.f32.mxu0 0.0
    %v976 = vand.u32 %v71, 4294901760
    %977 = vmatmul.mubr.f32.gmra.mxu0 %v976
    %v978 = vpop.f32.mrf.mxu0
    %v979 = vadd.f32 %v799, %v978
    %v980 = vpop.f32.mrf.mxu0
    %981 = vmatprep.mubr.f32.mxu0 0.0
    %v982 = vand.u32 %v74, 4294901760
    %983 = vmatmul.mubr.f32.gmra.mxu0 %v982
    %v984 = vpop.f32.mrf.mxu0
    %v985 = vadd.f32 %v807, %v984
    %v986 = vpop.f32.mrf.mxu0
    %987 = vmatprep.mubr.f32.mxu0 0.0
    %v988 = vand.u32 %v77, 4294901760
    %989 = vmatmul.mubr.f32.gmra.mxu0 %v988
    %v990 = vpop.f32.mrf.mxu0
    %v991 = vadd.f32 %v815, %v990
    %v992 = vpop.f32.mrf.mxu0
    %993 = vmatprep.mubr.f32.mxu0 0.0
    %v994 = vand.u32 %v80, 4294901760
    %995 = vmatmul.mubr.f32.gmra.mxu0 %v994
    %v996 = vpop.f32.mrf.mxu0
    %v997 = vadd.f32 %v823, %v996
    %v998 = vpop.f32.mrf.mxu0
    %999 = vmatprep.mubr.f32.mxu0 0.0
    %v1000 = vand.u32 %v83, 4294901760
    %1001 = vmatmul.mubr.f32.gmra.mxu0 %v1000
    %v1002 = vpop.f32.mrf.mxu0
    %v1003 = vadd.f32 %v831, %v1002
    %v1004 = vpop.f32.mrf.mxu0
    %1005 = vmatprep.mubr.f32.mxu0 0.0
    %v1006 = vand.u32 %v86, 4294901760
    %1007 = vmatmul.mubr.f32.gmra.mxu0 %v1006
    %v1008 = vpop.f32.mrf.mxu0
    %v1009 = vadd.f32 %v839, %v1008
    %v1010 = vpop.f32.mrf.mxu0
    %1011 = vmatprep.mubr.f32.mxu0 0.0
    %v1012 = vand.u32 %v89, 4294901760
    %1013 = vmatmul.mubr.f32.gmra.mxu0 %v1012
    %v1014 = vpop.f32.mrf.mxu0
    %v1015 = vadd.f32 %v847, %v1014
    %v1016 = vpop.f32.mrf.mxu0
    %1017 = vmatprep.mubr.f32.mxu0 0.0
    %v1018 = vand.u32 %v92, 4294901760
    %1019 = vmatmul.mubr.f32.gmra.mxu0 %v1018
    %v1020 = vpop.f32.mrf.mxu0
    %v1021 = vadd.f32 %v855, %v1020
    %v1022 = vpop.f32.mrf.mxu0
    %1023 = vmatprep.mubr.f32.mxu0 0.0
    %v1024 = vand.u32 %v95, 4294901760
    %1025 = vmatmul.mubr.f32.gmra.mxu0 %v1024
    %v1026 = vpop.f32.mrf.mxu0
    %v1027 = vadd.f32 %v863, %v1026
    %v1028 = vpop.f32.mrf.mxu0
    %1029 = vdwg.mxu0
    %1030 = vmatprep.subr.mxu0 0.0
    %1031 = vmatpush1.msra.mxu0 0.0
    %1032 = vmatprep.subr.mxu0 0.0
    %1033 = vmatpush1.msra.mxu0 0.0
    %1034 = vmatprep.subr.mxu0 0.0
    %1035 = vmatpush1.msra.mxu0 0.0
    %1036 = vmatprep.subr.mxu0 0.0
    %1037 = vmatpush1.msra.mxu0 0.0
    %1038 = vmatprep.subr.mxu0 0.0
    %1039 = vmatpush1.msra.mxu0 0.0
    %1040 = vmatprep.subr.mxu0 0.0
    %1041 = vmatpush1.msra.mxu0 0.0
    %1042 = vmatprep.subr.mxu0 0.0
    %1043 = vmatpush1.msra.mxu0 0.0
    %1044 = vmatprep.subr.mxu0 0.0
    %1045 = vmatpush1.msra.mxu0 0.0
    %1046 = vmatprep.subr.mxu0 0.0
    %1047 = vmatpush1.msra.mxu0 0.0
    %1048 = vmatprep.subr.mxu0 0.0
    %1049 = vmatpush1.msra.mxu0 0.0
    %1050 = vmatprep.subr.mxu0 0.0
    %1051 = vmatpush1.msra.mxu0 0.0
    %1052 = vmatprep.subr.mxu0 0.0
    %1053 = vmatpush1.msra.mxu0 0.0
    %1054 = vmatprep.subr.mxu0 0.0
    %1055 = vmatpush1.msra.mxu0 0.0
    %1056 = vmatprep.subr.mxu0 0.0
    %1057 = vmatpush1.msra.mxu0 0.0
    %1058 = vmatprep.subr.mxu0 0.0
    %1059 = vmatpush1.msra.mxu0 0.0
    %1060 = vmatprep.subr.mxu0 0.0
    %v1061 = vand.u32 %v99, 4294901760
    %1062 = vmatpush1.msra.mxu0 %v1061
    %1063 = vmatprep.subr.mxu0 0.0
    %1064 = vmatpush2.msra.mxu0 0.0
    %1065 = vmatprep.subr.mxu0 0.0
    %1066 = vmatpush2.msra.mxu0 0.0
    %1067 = vmatprep.subr.mxu0 0.0
    %1068 = vmatpush2.msra.mxu0 0.0
    %1069 = vmatprep.subr.mxu0 0.0
    %1070 = vmatpush2.msra.mxu0 0.0
    %1071 = vmatprep.subr.mxu0 0.0
    %1072 = vmatpush2.msra.mxu0 0.0
    %1073 = vmatprep.subr.mxu0 0.0
    %1074 = vmatpush2.msra.mxu0 0.0
    %1075 = vmatprep.subr.mxu0 0.0
    %1076 = vmatpush2.msra.mxu0 0.0
    %1077 = vmatprep.subr.mxu0 0.0
    %1078 = vmatpush2.msra.mxu0 0.0
    %1079 = vmatprep.subr.mxu0 0.0
    %1080 = vmatpush2.msra.mxu0 0.0
    %1081 = vmatprep.subr.mxu0 0.0
    %1082 = vmatpush2.msra.mxu0 0.0
    %1083 = vmatprep.subr.mxu0 0.0
    %1084 = vmatpush2.msra.mxu0 0.0
    %1085 = vmatprep.subr.mxu0 0.0
    %1086 = vmatpush2.msra.mxu0 0.0
    %1087 = vmatprep.subr.mxu0 0.0
    %1088 = vmatpush2.msra.mxu0 0.0
    %1089 = vmatprep.subr.mxu0 0.0
    %1090 = vmatpush2.msra.mxu0 0.0
    %1091 = vmatprep.subr.mxu0 0.0
    %1092 = vmatpush2.msra.mxu0 0.0
    %1093 = vmatprep.subr.mxu0 0.0
    %1094 = vmatpush2.msra.mxu0 0.0
    %1095 = vmatprep.mubr.f32.mxu0 0.0
    %v1096 = vand.u32 %v50, 4294901760
    %1097 = vmatmul.mubr.f32.gmra.mxu0 %v1096
    %v1098 = vpop.f32.mrf.mxu0
    %v1099 = vadd.f32 %v937, %v1098
    %v1100 = vpop.f32.mrf.mxu0
    %1101 = vmatprep.mubr.f32.mxu0 0.0
    %v1102 = vand.u32 %v53, 4294901760
    %1103 = vmatmul.mubr.f32.gmra.mxu0 %v1102
    %v1104 = vpop.f32.mrf.mxu0
    %v1105 = vadd.f32 %v943, %v1104
    %v1106 = vpop.f32.mrf.mxu0
    %1107 = vmatprep.mubr.f32.mxu0 0.0
    %v1108 = vand.u32 %v56, 4294901760
    %1109 = vmatmul.mubr.f32.gmra.mxu0 %v1108
    %v1110 = vpop.f32.mrf.mxu0
    %v1111 = vadd.f32 %v949, %v1110
    %v1112 = vpop.f32.mrf.mxu0
    %1113 = vmatprep.mubr.f32.mxu0 0.0
    %v1114 = vand.u32 %v59, 4294901760
    %1115 = vmatmul.mubr.f32.gmra.mxu0 %v1114
    %v1116 = vpop.f32.mrf.mxu0
    %v1117 = vadd.f32 %v955, %v1116
    %v1118 = vpop.f32.mrf.mxu0
    %1119 = vmatprep.mubr.f32.mxu0 0.0
    %v1120 = vand.u32 %v62, 4294901760
    %1121 = vmatmul.mubr.f32.gmra.mxu0 %v1120
    %v1122 = vpop.f32.mrf.mxu0
    %v1123 = vadd.f32 %v961, %v1122
    %v1124 = vpop.f32.mrf.mxu0
    %1125 = vmatprep.mubr.f32.mxu0 0.0
    %v1126 = vand.u32 %v65, 4294901760
    %1127 = vmatmul.mubr.f32.gmra.mxu0 %v1126
    %v1128 = vpop.f32.mrf.mxu0
    %v1129 = vadd.f32 %v967, %v1128
    %v1130 = vpop.f32.mrf.mxu0
    %1131 = vmatprep.mubr.f32.mxu0 0.0
    %v1132 = vand.u32 %v68, 4294901760
    %1133 = vmatmul.mubr.f32.gmra.mxu0 %v1132
    %v1134 = vpop.f32.mrf.mxu0
    %v1135 = vadd.f32 %v973, %v1134
    %v1136 = vpop.f32.mrf.mxu0
    %1137 = vmatprep.mubr.f32.mxu0 0.0
    %v1138 = vand.u32 %v71, 4294901760
    %1139 = vmatmul.mubr.f32.gmra.mxu0 %v1138
    %v1140 = vpop.f32.mrf.mxu0
    %v1141 = vadd.f32 %v979, %v1140
    %v1142 = vpop.f32.mrf.mxu0
    %1143 = vmatprep.mubr.f32.mxu0 0.0
    %v1144 = vand.u32 %v74, 4294901760
    %1145 = vmatmul.mubr.f32.gmra.mxu0 %v1144
    %v1146 = vpop.f32.mrf.mxu0
    %v1147 = vadd.f32 %v985, %v1146
    %v1148 = vpop.f32.mrf.mxu0
    %1149 = vmatprep.mubr.f32.mxu0 0.0
    %v1150 = vand.u32 %v77, 4294901760
    %1151 = vmatmul.mubr.f32.gmra.mxu0 %v1150
    %v1152 = vpop.f32.mrf.mxu0
    %v1153 = vadd.f32 %v991, %v1152
    %v1154 = vpop.f32.mrf.mxu0
    %1155 = vmatprep.mubr.f32.mxu0 0.0
    %v1156 = vand.u32 %v80, 4294901760
    %1157 = vmatmul.mubr.f32.gmra.mxu0 %v1156
    %v1158 = vpop.f32.mrf.mxu0
    %v1159 = vadd.f32 %v997, %v1158
    %v1160 = vpop.f32.mrf.mxu0
    %1161 = vmatprep.mubr.f32.mxu0 0.0
    %v1162 = vand.u32 %v83, 4294901760
    %1163 = vmatmul.mubr.f32.gmra.mxu0 %v1162
    %v1164 = vpop.f32.mrf.mxu0
    %v1165 = vadd.f32 %v1003, %v1164
    %v1166 = vpop.f32.mrf.mxu0
    %1167 = vmatprep.mubr.f32.mxu0 0.0
    %v1168 = vand.u32 %v86, 4294901760
    %1169 = vmatmul.mubr.f32.gmra.mxu0 %v1168
    %v1170 = vpop.f32.mrf.mxu0
    %v1171 = vadd.f32 %v1009, %v1170
    %v1172 = vpop.f32.mrf.mxu0
    %1173 = vmatprep.mubr.f32.mxu0 0.0
    %v1174 = vand.u32 %v89, 4294901760
    %1175 = vmatmul.mubr.f32.gmra.mxu0 %v1174
    %v1176 = vpop.f32.mrf.mxu0
    %v1177 = vadd.f32 %v1015, %v1176
    %v1178 = vpop.f32.mrf.mxu0
    %1179 = vmatprep.mubr.f32.mxu0 0.0
    %v1180 = vand.u32 %v92, 4294901760
    %1181 = vmatmul.mubr.f32.gmra.mxu0 %v1180
    %v1182 = vpop.f32.mrf.mxu0
    %v1183 = vadd.f32 %v1021, %v1182
    %v1184 = vpop.f32.mrf.mxu0
    %1185 = vmatprep.mubr.f32.mxu0 0.0
    %v1186 = vand.u32 %v95, 4294901760
    %1187 = vmatmul.mubr.f32.gmra.mxu0 %v1186
    %v1188 = vpop.f32.mrf.mxu0
    %v1189 = vadd.f32 %v1027, %v1188
    %v1190 = vpop.f32.mrf.mxu0
    %1191 = vdwg.mxu0
    %v1192 = vmul.f32 %v1099, 1.442695
    %v1193 = vpow.pop %v1192
    %v1194 = vmul.f32 %v1105, 1.442695
    %v1195 = vpow.pop %v1194
    %v1196 = vmul.f32 %v1111, 1.442695
    %v1197 = vpow.pop %v1196
    %v1198 = vmul.f32 %v1117, 1.442695
    %v1199 = vpow.pop %v1198
    %v1200 = vmul.f32 %v1123, 1.442695
    %v1201 = vpow.pop %v1200
    %v1202 = vmul.f32 %v1129, 1.442695
    %v1203 = vpow.pop %v1202
    %v1204 = vmul.f32 %v1135, 1.442695
    %v1205 = vpow.pop %v1204
    %v1206 = vmul.f32 %v1141, 1.442695
    %v1207 = vpow.pop %v1206
    %v1208 = vmul.f32 %v1147, 1.442695
    %v1209 = vpow.pop %v1208
    %v1210 = vmul.f32 %v1153, 1.442695
    %v1211 = vpow.pop %v1210
    %v1212 = vmul.f32 %v1159, 1.442695
    %v1213 = vpow.pop %v1212
    %v1214 = vmul.f32 %v1165, 1.442695
    %v1215 = vpow.pop %v1214
    %v1216 = vmul.f32 %v1171, 1.442695
    %v1217 = vpow.pop %v1216
    %v1218 = vmul.f32 %v1177, 1.442695
    %v1219 = vpow.pop %v1218
    %v1220 = vmul.f32 %v1183, 1.442695
    %v1221 = vpow.pop %v1220
    %v1222 = vmul.f32 %v1189, 1.442695
    %v1223 = vpow.pop %v1222
    %1224 = vmatprep.subr.mxu0 0.0
    %v1225 = vand.u32 %v47, 4294901760
    %1226 = vmatpush1.msra.mxu0 %v1225
    %1227 = vmatprep.subr.mxu0 0.0
    %v1228 = vand.u32 %v46, 4294901760
    %1229 = vmatpush1.msra.mxu0 %v1228
    %1230 = vmatprep.subr.mxu0 0.0
    %v1231 = vand.u32 %v45, 4294901760
    %1232 = vmatpush1.msra.mxu0 %v1231
    %1233 = vmatprep.subr.mxu0 0.0
    %v1234 = vand.u32 %v44, 4294901760
    %1235 = vmatpush1.msra.mxu0 %v1234
    %1236 = vmatprep.subr.mxu0 0.0
    %v1237 = vand.u32 %v43, 4294901760
    %1238 = vmatpush1.msra.mxu0 %v1237
    %1239 = vmatprep.subr.mxu0 0.0
    %v1240 = vand.u32 %v42, 4294901760
    %1241 = vmatpush1.msra.mxu0 %v1240
    %1242 = vmatprep.subr.mxu0 0.0
    %v1243 = vand.u32 %v41, 4294901760
    %1244 = vmatpush1.msra.mxu0 %v1243
    %1245 = vmatprep.subr.mxu0 0.0
    %v1246 = vand.u32 %v40, 4294901760
    %1247 = vmatpush1.msra.mxu0 %v1246
    %1248 = vmatprep.subr.mxu0 0.0
    %v1249 = vand.u32 %v39, 4294901760
    %1250 = vmatpush1.msra.mxu0 %v1249
    %1251 = vmatprep.subr.mxu0 0.0
    %v1252 = vand.u32 %v38, 4294901760
    %1253 = vmatpush1.msra.mxu0 %v1252
    %1254 = vmatprep.subr.mxu0 0.0
    %v1255 = vand.u32 %v37, 4294901760
    %1256 = vmatpush1.msra.mxu0 %v1255
    %1257 = vmatprep.subr.mxu0 0.0
    %v1258 = vand.u32 %v36, 4294901760
    %1259 = vmatpush1.msra.mxu0 %v1258
    %1260 = vmatprep.subr.mxu0 0.0
    %v1261 = vand.u32 %v35, 4294901760
    %1262 = vmatpush1.msra.mxu0 %v1261
    %1263 = vmatprep.subr.mxu0 0.0
    %v1264 = vand.u32 %v34, 4294901760
    %1265 = vmatpush1.msra.mxu0 %v1264
    %1266 = vmatprep.subr.mxu0 0.0
    %v1267 = vand.u32 %v33, 4294901760
    %1268 = vmatpush1.msra.mxu0 %v1267
    %1269 = vmatprep.subr.mxu0 0.0
    %v1270 = vand.u32 %v32, 4294901760
    %1271 = vmatpush1.msra.mxu0 %v1270
    %1272 = vmatprep.subr.mxu0 0.0
    %1273 = vmatpush2.msra.mxu0 0.0
    %1274 = vmatprep.subr.mxu0 0.0
    %1275 = vmatpush2.msra.mxu0 0.0
    %1276 = vmatprep.subr.mxu0 0.0
    %1277 = vmatpush2.msra.mxu0 0.0
    %1278 = vmatprep.subr.mxu0 0.0
    %1279 = vmatpush2.msra.mxu0 0.0
    %1280 = vmatprep.subr.mxu0 0.0
    %1281 = vmatpush2.msra.mxu0 0.0
    %1282 = vmatprep.subr.mxu0 0.0
    %1283 = vmatpush2.msra.mxu0 0.0
    %1284 = vmatprep.subr.mxu0 0.0
    %1285 = vmatpush2.msra.mxu0 0.0
    %1286 = vmatprep.subr.mxu0 0.0
    %1287 = vmatpush2.msra.mxu0 0.0
    %1288 = vmatprep.subr.mxu0 0.0
    %1289 = vmatpush2.msra.mxu0 0.0
    %1290 = vmatprep.subr.mxu0 0.0
    %1291 = vmatpush2.msra.mxu0 0.0
    %1292 = vmatprep.subr.mxu0 0.0
    %1293 = vmatpush2.msra.mxu0 0.0
    %1294 = vmatprep.subr.mxu0 0.0
    %1295 = vmatpush2.msra.mxu0 0.0
    %1296 = vmatprep.subr.mxu0 0.0
    %1297 = vmatpush2.msra.mxu0 0.0
    %1298 = vmatprep.subr.mxu0 0.0
    %1299 = vmatpush2.msra.mxu0 0.0
    %1300 = vmatprep.subr.mxu0 0.0
    %1301 = vmatpush2.msra.mxu0 0.0
    %1302 = vmatprep.subr.mxu0 0.0
    %1303 = vmatpush2.msra.mxu0 0.0
    %1304 = vmatprep.mubr.f32.mxu0 0.0
    %v1305 = vand.u32 %v1193, 4294901760
    %v1306 = vsub.f32 %v1193, %v1305
    %v1307 = vand.u32 %v1306, 4294901760
    %v1308 = vsub.f32 %v1306, %v1307
    %v1309 = vand.u32 %v1308, 4294901760
    %1310 = vmatmul.mubr.f32.gmra.mxu0 %v1309
    %v1311 = vpop.f32.mrf.mxu0
    %v1312 = vadd.f32 0.0, %v1311
    %v1313 = vpop.f32.mrf.mxu0
    %1314 = vmatprep.mubr.f32.mxu0 0.0
    %v1315 = vand.u32 %v1195, 4294901760
    %v1316 = vsub.f32 %v1195, %v1315
    %v1317 = vand.u32 %v1316, 4294901760
    %v1318 = vsub.f32 %v1316, %v1317
    %v1319 = vand.u32 %v1318, 4294901760
    %1320 = vmatmul.mubr.f32.gmra.mxu0 %v1319
    %v1321 = vpop.f32.mrf.mxu0
    %v1322 = vadd.f32 0.0, %v1321
    %v1323 = vpop.f32.mrf.mxu0
    %1324 = vmatprep.mubr.f32.mxu0 0.0
    %v1325 = vand.u32 %v1197, 4294901760
    %v1326 = vsub.f32 %v1197, %v1325
    %v1327 = vand.u32 %v1326, 4294901760
    %v1328 = vsub.f32 %v1326, %v1327
    %v1329 = vand.u32 %v1328, 4294901760
    %1330 = vmatmul.mubr.f32.gmra.mxu0 %v1329
    %v1331 = vpop.f32.mrf.mxu0
    %v1332 = vadd.f32 0.0, %v1331
    %v1333 = vpop.f32.mrf.mxu0
    %1334 = vmatprep.mubr.f32.mxu0 0.0
    %v1335 = vand.u32 %v1199, 4294901760
    %v1336 = vsub.f32 %v1199, %v1335
    %v1337 = vand.u32 %v1336, 4294901760
    %v1338 = vsub.f32 %v1336, %v1337
    %v1339 = vand.u32 %v1338, 4294901760
    %1340 = vmatmul.mubr.f32.gmra.mxu0 %v1339
    %v1341 = vpop.f32.mrf.mxu0
    %v1342 = vadd.f32 0.0, %v1341
    %v1343 = vpop.f32.mrf.mxu0
    %1344 = vmatprep.mubr.f32.mxu0 0.0
    %v1345 = vand.u32 %v1201, 4294901760
    %v1346 = vsub.f32 %v1201, %v1345
    %v1347 = vand.u32 %v1346, 4294901760
    %v1348 = vsub.f32 %v1346, %v1347
    %v1349 = vand.u32 %v1348, 4294901760
    %1350 = vmatmul.mubr.f32.gmra.mxu0 %v1349
    %v1351 = vpop.f32.mrf.mxu0
    %v1352 = vadd.f32 0.0, %v1351
    %v1353 = vpop.f32.mrf.mxu0
    %1354 = vmatprep.mubr.f32.mxu0 0.0
    %v1355 = vand.u32 %v1203, 4294901760
    %v1356 = vsub.f32 %v1203, %v1355
    %v1357 = vand.u32 %v1356, 4294901760
    %v1358 = vsub.f32 %v1356, %v1357
    %v1359 = vand.u32 %v1358, 4294901760
    %1360 = vmatmul.mubr.f32.gmra.mxu0 %v1359
    %v1361 = vpop.f32.mrf.mxu0
    %v1362 = vadd.f32 0.0, %v1361
    %v1363 = vpop.f32.mrf.mxu0
    %1364 = vmatprep.mubr.f32.mxu0 0.0
    %v1365 = vand.u32 %v1205, 4294901760
    %v1366 = vsub.f32 %v1205, %v1365
    %v1367 = vand.u32 %v1366, 4294901760
    %v1368 = vsub.f32 %v1366, %v1367
    %v1369 = vand.u32 %v1368, 4294901760
    %1370 = vmatmul.mubr.f32.gmra.mxu0 %v1369
    %v1371 = vpop.f32.mrf.mxu0
    %v1372 = vadd.f32 0.0, %v1371
    %v1373 = vpop.f32.mrf.mxu0
    %1374 = vmatprep.mubr.f32.mxu0 0.0
    %v1375 = vand.u32 %v1207, 4294901760
    %v1376 = vsub.f32 %v1207, %v1375
    %v1377 = vand.u32 %v1376, 4294901760
    %v1378 = vsub.f32 %v1376, %v1377
    %v1379 = vand.u32 %v1378, 4294901760
    %1380 = vmatmul.mubr.f32.gmra.mxu0 %v1379
    %v1381 = vpop.f32.mrf.mxu0
    %v1382 = vadd.f32 0.0, %v1381
    %v1383 = vpop.f32.mrf.mxu0
    %1384 = vmatprep.mubr.f32.mxu0 0.0
    %v1385 = vand.u32 %v1209, 4294901760
    %v1386 = vsub.f32 %v1209, %v1385
    %v1387 = vand.u32 %v1386, 4294901760
    %v1388 = vsub.f32 %v1386, %v1387
    %v1389 = vand.u32 %v1388, 4294901760
    %1390 = vmatmul.mubr.f32.gmra.mxu0 %v1389
    %v1391 = vpop.f32.mrf.mxu0
    %v1392 = vadd.f32 0.0, %v1391
    %v1393 = vpop.f32.mrf.mxu0
    %1394 = vmatprep.mubr.f32.mxu0 0.0
    %v1395 = vand.u32 %v1211, 4294901760
    %v1396 = vsub.f32 %v1211, %v1395
    %v1397 = vand.u32 %v1396, 4294901760
    %v1398 = vsub.f32 %v1396, %v1397
    %v1399 = vand.u32 %v1398, 4294901760
    %1400 = vmatmul.mubr.f32.gmra.mxu0 %v1399
    %v1401 = vpop.f32.mrf.mxu0
    %v1402 = vadd.f32 0.0, %v1401
    %v1403 = vpop.f32.mrf.mxu0
    %1404 = vmatprep.mubr.f32.mxu0 0.0
    %v1405 = vand.u32 %v1213, 4294901760
    %v1406 = vsub.f32 %v1213, %v1405
    %v1407 = vand.u32 %v1406, 4294901760
    %v1408 = vsub.f32 %v1406, %v1407
    %v1409 = vand.u32 %v1408, 4294901760
    %1410 = vmatmul.mubr.f32.gmra.mxu0 %v1409
    %v1411 = vpop.f32.mrf.mxu0
    %v1412 = vadd.f32 0.0, %v1411
    %v1413 = vpop.f32.mrf.mxu0
    %1414 = vmatprep.mubr.f32.mxu0 0.0
    %v1415 = vand.u32 %v1215, 4294901760
    %v1416 = vsub.f32 %v1215, %v1415
    %v1417 = vand.u32 %v1416, 4294901760
    %v1418 = vsub.f32 %v1416, %v1417
    %v1419 = vand.u32 %v1418, 4294901760
    %1420 = vmatmul.mubr.f32.gmra.mxu0 %v1419
    %v1421 = vpop.f32.mrf.mxu0
    %v1422 = vadd.f32 0.0, %v1421
    %v1423 = vpop.f32.mrf.mxu0
    %1424 = vmatprep.mubr.f32.mxu0 0.0
    %v1425 = vand.u32 %v1217, 4294901760
    %v1426 = vsub.f32 %v1217, %v1425
    %v1427 = vand.u32 %v1426, 4294901760
    %v1428 = vsub.f32 %v1426, %v1427
    %v1429 = vand.u32 %v1428, 4294901760
    %1430 = vmatmul.mubr.f32.gmra.mxu0 %v1429
    %v1431 = vpop.f32.mrf.mxu0
    %v1432 = vadd.f32 0.0, %v1431
    %v1433 = vpop.f32.mrf.mxu0
    %1434 = vmatprep.mubr.f32.mxu0 0.0
    %v1435 = vand.u32 %v1219, 4294901760
    %v1436 = vsub.f32 %v1219, %v1435
    %v1437 = vand.u32 %v1436, 4294901760
    %v1438 = vsub.f32 %v1436, %v1437
    %v1439 = vand.u32 %v1438, 4294901760
    %1440 = vmatmul.mubr.f32.gmra.mxu0 %v1439
    %v1441 = vpop.f32.mrf.mxu0
    %v1442 = vadd.f32 0.0, %v1441
    %v1443 = vpop.f32.mrf.mxu0
    %1444 = vmatprep.mubr.f32.mxu0 0.0
    %v1445 = vand.u32 %v1221, 4294901760
    %v1446 = vsub.f32 %v1221, %v1445
    %v1447 = vand.u32 %v1446, 4294901760
    %v1448 = vsub.f32 %v1446, %v1447
    %v1449 = vand.u32 %v1448, 4294901760
    %1450 = vmatmul.mubr.f32.gmra.mxu0 %v1449
    %v1451 = vpop.f32.mrf.mxu0
    %v1452 = vadd.f32 0.0, %v1451
    %v1453 = vpop.f32.mrf.mxu0
    %1454 = vmatprep.mubr.f32.mxu0 0.0
    %v1455 = vand.u32 %v1223, 4294901760
    %v1456 = vsub.f32 %v1223, %v1455
    %v1457 = vand.u32 %v1456, 4294901760
    %v1458 = vsub.f32 %v1456, %v1457
    %v1459 = vand.u32 %v1458, 4294901760
    %1460 = vmatmul.mubr.f32.gmra.mxu0 %v1459
    %v1461 = vpop.f32.mrf.mxu0
    %v1462 = vadd.f32 0.0, %v1461
    %v1463 = vpop.f32.mrf.mxu0
    %1464 = vdwg.mxu0
    %1465 = vmatprep.subr.mxu0 0.0
    %v1466 = vand.u32 %v47, 4294901760
    %v1467 = vsub.f32 %v47, %v1466
    %v1468 = vand.u32 %v1467, 4294901760
    %v1469 = vsub.f32 %v1467, %v1468
    %v1470 = vand.u32 %v1469, 4294901760
    %1471 = vmatpush1.msra.mxu0 %v1470
    %1472 = vmatprep.subr.mxu0 0.0
    %v1473 = vand.u32 %v46, 4294901760
    %v1474 = vsub.f32 %v46, %v1473
    %v1475 = vand.u32 %v1474, 4294901760
    %v1476 = vsub.f32 %v1474, %v1475
    %v1477 = vand.u32 %v1476, 4294901760
    %1478 = vmatpush1.msra.mxu0 %v1477
    %1479 = vmatprep.subr.mxu0 0.0
    %v1480 = vand.u32 %v45, 4294901760
    %v1481 = vsub.f32 %v45, %v1480
    %v1482 = vand.u32 %v1481, 4294901760
    %v1483 = vsub.f32 %v1481, %v1482
    %v1484 = vand.u32 %v1483, 4294901760
    %1485 = vmatpush1.msra.mxu0 %v1484
    %1486 = vmatprep.subr.mxu0 0.0
    %v1487 = vand.u32 %v44, 4294901760
    %v1488 = vsub.f32 %v44, %v1487
    %v1489 = vand.u32 %v1488, 4294901760
    %v1490 = vsub.f32 %v1488, %v1489
    %v1491 = vand.u32 %v1490, 4294901760
    %1492 = vmatpush1.msra.mxu0 %v1491
    %1493 = vmatprep.subr.mxu0 0.0
    %v1494 = vand.u32 %v43, 4294901760
    %v1495 = vsub.f32 %v43, %v1494
    %v1496 = vand.u32 %v1495, 4294901760
    %v1497 = vsub.f32 %v1495, %v1496
    %v1498 = vand.u32 %v1497, 4294901760
    %1499 = vmatpush1.msra.mxu0 %v1498
    %1500 = vmatprep.subr.mxu0 0.0
    %v1501 = vand.u32 %v42, 4294901760
    %v1502 = vsub.f32 %v42, %v1501
    %v1503 = vand.u32 %v1502, 4294901760
    %v1504 = vsub.f32 %v1502, %v1503
    %v1505 = vand.u32 %v1504, 4294901760
    %1506 = vmatpush1.msra.mxu0 %v1505
    %1507 = vmatprep.subr.mxu0 0.0
    %v1508 = vand.u32 %v41, 4294901760
    %v1509 = vsub.f32 %v41, %v1508
    %v1510 = vand.u32 %v1509, 4294901760
    %v1511 = vsub.f32 %v1509, %v1510
    %v1512 = vand.u32 %v1511, 4294901760
    %1513 = vmatpush1.msra.mxu0 %v1512
    %1514 = vmatprep.subr.mxu0 0.0
    %v1515 = vand.u32 %v40, 4294901760
    %v1516 = vsub.f32 %v40, %v1515
    %v1517 = vand.u32 %v1516, 4294901760
    %v1518 = vsub.f32 %v1516, %v1517
    %v1519 = vand.u32 %v1518, 4294901760
    %1520 = vmatpush1.msra.mxu0 %v1519
    %1521 = vmatprep.subr.mxu0 0.0
    %v1522 = vand.u32 %v39, 4294901760
    %v1523 = vsub.f32 %v39, %v1522
    %v1524 = vand.u32 %v1523, 4294901760
    %v1525 = vsub.f32 %v1523, %v1524
    %v1526 = vand.u32 %v1525, 4294901760
    %1527 = vmatpush1.msra.mxu0 %v1526
    %1528 = vmatprep.subr.mxu0 0.0
    %v1529 = vand.u32 %v38, 4294901760
    %v1530 = vsub.f32 %v38, %v1529
    %v1531 = vand.u32 %v1530, 4294901760
    %v1532 = vsub.f32 %v1530, %v1531
    %v1533 = vand.u32 %v1532, 4294901760
    %1534 = vmatpush1.msra.mxu0 %v1533
    %1535 = vmatprep.subr.mxu0 0.0
    %v1536 = vand.u32 %v37, 4294901760
    %v1537 = vsub.f32 %v37, %v1536
    %v1538 = vand.u32 %v1537, 4294901760
    %v1539 = vsub.f32 %v1537, %v1538
    %v1540 = vand.u32 %v1539, 4294901760
    %1541 = vmatpush1.msra.mxu0 %v1540
    %1542 = vmatprep.subr.mxu0 0.0
    %v1543 = vand.u32 %v36, 4294901760
    %v1544 = vsub.f32 %v36, %v1543
    %v1545 = vand.u32 %v1544, 4294901760
    %v1546 = vsub.f32 %v1544, %v1545
    %v1547 = vand.u32 %v1546, 4294901760
    %1548 = vmatpush1.msra.mxu0 %v1547
    %1549 = vmatprep.subr.mxu0 0.0
    %v1550 = vand.u32 %v35, 4294901760
    %v1551 = vsub.f32 %v35, %v1550
    %v1552 = vand.u32 %v1551, 4294901760
    %v1553 = vsub.f32 %v1551, %v1552
    %v1554 = vand.u32 %v1553, 4294901760
    %1555 = vmatpush1.msra.mxu0 %v1554
    %1556 = vmatprep.subr.mxu0 0.0
    %v1557 = vand.u32 %v34, 4294901760
    %v1558 = vsub.f32 %v34, %v1557
    %v1559 = vand.u32 %v1558, 4294901760
    %v1560 = vsub.f32 %v1558, %v1559
    %v1561 = vand.u32 %v1560, 4294901760
    %1562 = vmatpush1.msra.mxu0 %v1561
    %1563 = vmatprep.subr.mxu0 0.0
    %v1564 = vand.u32 %v33, 4294901760
    %v1565 = vsub.f32 %v33, %v1564
    %v1566 = vand.u32 %v1565, 4294901760
    %v1567 = vsub.f32 %v1565, %v1566
    %v1568 = vand.u32 %v1567, 4294901760
    %1569 = vmatpush1.msra.mxu0 %v1568
    %1570 = vmatprep.subr.mxu0 0.0
    %v1571 = vand.u32 %v32, 4294901760
    %v1572 = vsub.f32 %v32, %v1571
    %v1573 = vand.u32 %v1572, 4294901760
    %v1574 = vsub.f32 %v1572, %v1573
    %v1575 = vand.u32 %v1574, 4294901760
    %1576 = vmatpush1.msra.mxu0 %v1575
    %1577 = vmatprep.subr.mxu0 0.0
    %1578 = vmatpush2.msra.mxu0 0.0
    %1579 = vmatprep.subr.mxu0 0.0
    %1580 = vmatpush2.msra.mxu0 0.0
    %1581 = vmatprep.subr.mxu0 0.0
    %1582 = vmatpush2.msra.mxu0 0.0
    %1583 = vmatprep.subr.mxu0 0.0
    %1584 = vmatpush2.msra.mxu0 0.0
    %1585 = vmatprep.subr.mxu0 0.0
    %1586 = vmatpush2.msra.mxu0 0.0
    %1587 = vmatprep.subr.mxu0 0.0
    %1588 = vmatpush2.msra.mxu0 0.0
    %1589 = vmatprep.subr.mxu0 0.0
    %1590 = vmatpush2.msra.mxu0 0.0
    %1591 = vmatprep.subr.mxu0 0.0
    %1592 = vmatpush2.msra.mxu0 0.0
    %1593 = vmatprep.subr.mxu0 0.0
    %1594 = vmatpush2.msra.mxu0 0.0
    %1595 = vmatprep.subr.mxu0 0.0
    %1596 = vmatpush2.msra.mxu0 0.0
    %1597 = vmatprep.subr.mxu0 0.0
    %1598 = vmatpush2.msra.mxu0 0.0
    %1599 = vmatprep.subr.mxu0 0.0
    %1600 = vmatpush2.msra.mxu0 0.0
    %1601 = vmatprep.subr.mxu0 0.0
    %1602 = vmatpush2.msra.mxu0 0.0
    %1603 = vmatprep.subr.mxu0 0.0
    %1604 = vmatpush2.msra.mxu0 0.0
    %1605 = vmatprep.subr.mxu0 0.0
    %1606 = vmatpush2.msra.mxu0 0.0
    %1607 = vmatprep.subr.mxu0 0.0
    %1608 = vmatpush2.msra.mxu0 0.0
    %1609 = vmatprep.mubr.f32.mxu0 0.0
    %v1610 = vand.u32 %v1193, 4294901760
    %1611 = vmatmul.mubr.f32.gmra.mxu0 %v1610
    %v1612 = vpop.f32.mrf.mxu0
    %v1613 = vadd.f32 %v1312, %v1612
    %v1614 = vpop.f32.mrf.mxu0
    %1615 = vmatprep.mubr.f32.mxu0 0.0
    %v1616 = vand.u32 %v1195, 4294901760
    %1617 = vmatmul.mubr.f32.gmra.mxu0 %v1616
    %v1618 = vpop.f32.mrf.mxu0
    %v1619 = vadd.f32 %v1322, %v1618
    %v1620 = vpop.f32.mrf.mxu0
    %1621 = vmatprep.mubr.f32.mxu0 0.0
    %v1622 = vand.u32 %v1197, 4294901760
    %1623 = vmatmul.mubr.f32.gmra.mxu0 %v1622
    %v1624 = vpop.f32.mrf.mxu0
    %v1625 = vadd.f32 %v1332, %v1624
    %v1626 = vpop.f32.mrf.mxu0
    %1627 = vmatprep.mubr.f32.mxu0 0.0
    %v1628 = vand.u32 %v1199, 4294901760
    %1629 = vmatmul.mubr.f32.gmra.mxu0 %v1628
    %v1630 = vpop.f32.mrf.mxu0
    %v1631 = vadd.f32 %v1342, %v1630
    %v1632 = vpop.f32.mrf.mxu0
    %1633 = vmatprep.mubr.f32.mxu0 0.0
    %v1634 = vand.u32 %v1201, 4294901760
    %1635 = vmatmul.mubr.f32.gmra.mxu0 %v1634
    %v1636 = vpop.f32.mrf.mxu0
    %v1637 = vadd.f32 %v1352, %v1636
    %v1638 = vpop.f32.mrf.mxu0
    %1639 = vmatprep.mubr.f32.mxu0 0.0
    %v1640 = vand.u32 %v1203, 4294901760
    %1641 = vmatmul.mubr.f32.gmra.mxu0 %v1640
    %v1642 = vpop.f32.mrf.mxu0
    %v1643 = vadd.f32 %v1362, %v1642
    %v1644 = vpop.f32.mrf.mxu0
    %1645 = vmatprep.mubr.f32.mxu0 0.0
    %v1646 = vand.u32 %v1205, 4294901760
    %1647 = vmatmul.mubr.f32.gmra.mxu0 %v1646
    %v1648 = vpop.f32.mrf.mxu0
    %v1649 = vadd.f32 %v1372, %v1648
    %v1650 = vpop.f32.mrf.mxu0
    %1651 = vmatprep.mubr.f32.mxu0 0.0
    %v1652 = vand.u32 %v1207, 4294901760
    %1653 = vmatmul.mubr.f32.gmra.mxu0 %v1652
    %v1654 = vpop.f32.mrf.mxu0
    %v1655 = vadd.f32 %v1382, %v1654
    %v1656 = vpop.f32.mrf.mxu0
    %1657 = vmatprep.mubr.f32.mxu0 0.0
    %v1658 = vand.u32 %v1209, 4294901760
    %1659 = vmatmul.mubr.f32.gmra.mxu0 %v1658
    %v1660 = vpop.f32.mrf.mxu0
    %v1661 = vadd.f32 %v1392, %v1660
    %v1662 = vpop.f32.mrf.mxu0
    %1663 = vmatprep.mubr.f32.mxu0 0.0
    %v1664 = vand.u32 %v1211, 4294901760
    %1665 = vmatmul.mubr.f32.gmra.mxu0 %v1664
    %v1666 = vpop.f32.mrf.mxu0
    %v1667 = vadd.f32 %v1402, %v1666
    %v1668 = vpop.f32.mrf.mxu0
    %1669 = vmatprep.mubr.f32.mxu0 0.0
    %v1670 = vand.u32 %v1213, 4294901760
    %1671 = vmatmul.mubr.f32.gmra.mxu0 %v1670
    %v1672 = vpop.f32.mrf.mxu0
    %v1673 = vadd.f32 %v1412, %v1672
    %v1674 = vpop.f32.mrf.mxu0
    %1675 = vmatprep.mubr.f32.mxu0 0.0
    %v1676 = vand.u32 %v1215, 4294901760
    %1677 = vmatmul.mubr.f32.gmra.mxu0 %v1676
    %v1678 = vpop.f32.mrf.mxu0
    %v1679 = vadd.f32 %v1422, %v1678
    %v1680 = vpop.f32.mrf.mxu0
    %1681 = vmatprep.mubr.f32.mxu0 0.0
    %v1682 = vand.u32 %v1217, 4294901760
    %1683 = vmatmul.mubr.f32.gmra.mxu0 %v1682
    %v1684 = vpop.f32.mrf.mxu0
    %v1685 = vadd.f32 %v1432, %v1684
    %v1686 = vpop.f32.mrf.mxu0
    %1687 = vmatprep.mubr.f32.mxu0 0.0
    %v1688 = vand.u32 %v1219, 4294901760
    %1689 = vmatmul.mubr.f32.gmra.mxu0 %v1688
    %v1690 = vpop.f32.mrf.mxu0
    %v1691 = vadd.f32 %v1442, %v1690
    %v1692 = vpop.f32.mrf.mxu0
    %1693 = vmatprep.mubr.f32.mxu0 0.0
    %v1694 = vand.u32 %v1221, 4294901760
    %1695 = vmatmul.mubr.f32.gmra.mxu0 %v1694
    %v1696 = vpop.f32.mrf.mxu0
    %v1697 = vadd.f32 %v1452, %v1696
    %v1698 = vpop.f32.mrf.mxu0
    %1699 = vmatprep.mubr.f32.mxu0 0.0
    %v1700 = vand.u32 %v1223, 4294901760
    %1701 = vmatmul.mubr.f32.gmra.mxu0 %v1700
    %v1702 = vpop.f32.mrf.mxu0
    %v1703 = vadd.f32 %v1462, %v1702
    %v1704 = vpop.f32.mrf.mxu0
    %1705 = vdwg.mxu0
    %1706 = vmatprep.subr.mxu0 0.0
    %v1707 = vand.u32 %v47, 4294901760
    %v1708 = vsub.f32 %v47, %v1707
    %1709 = vmatpush1.msra.mxu0 %v1708
    %1710 = vmatprep.subr.mxu0 0.0
    %v1711 = vand.u32 %v46, 4294901760
    %v1712 = vsub.f32 %v46, %v1711
    %1713 = vmatpush1.msra.mxu0 %v1712
    %1714 = vmatprep.subr.mxu0 0.0
    %v1715 = vand.u32 %v45, 4294901760
    %v1716 = vsub.f32 %v45, %v1715
    %1717 = vmatpush1.msra.mxu0 %v1716
    %1718 = vmatprep.subr.mxu0 0.0
    %v1719 = vand.u32 %v44, 4294901760
    %v1720 = vsub.f32 %v44, %v1719
    %1721 = vmatpush1.msra.mxu0 %v1720
    %1722 = vmatprep.subr.mxu0 0.0
    %v1723 = vand.u32 %v43, 4294901760
    %v1724 = vsub.f32 %v43, %v1723
    %1725 = vmatpush1.msra.mxu0 %v1724
    %1726 = vmatprep.subr.mxu0 0.0
    %v1727 = vand.u32 %v42, 4294901760
    %v1728 = vsub.f32 %v42, %v1727
    %1729 = vmatpush1.msra.mxu0 %v1728
    %1730 = vmatprep.subr.mxu0 0.0
    %v1731 = vand.u32 %v41, 4294901760
    %v1732 = vsub.f32 %v41, %v1731
    %1733 = vmatpush1.msra.mxu0 %v1732
    %1734 = vmatprep.subr.mxu0 0.0
    %v1735 = vand.u32 %v40, 4294901760
    %v1736 = vsub.f32 %v40, %v1735
    %1737 = vmatpush1.msra.mxu0 %v1736
    %1738 = vmatprep.subr.mxu0 0.0
    %v1739 = vand.u32 %v39, 4294901760
    %v1740 = vsub.f32 %v39, %v1739
    %1741 = vmatpush1.msra.mxu0 %v1740
    %1742 = vmatprep.subr.mxu0 0.0
    %v1743 = vand.u32 %v38, 4294901760
    %v1744 = vsub.f32 %v38, %v1743
    %1745 = vmatpush1.msra.mxu0 %v1744
    %1746 = vmatprep.subr.mxu0 0.0
    %v1747 = vand.u32 %v37, 4294901760
    %v1748 = vsub.f32 %v37, %v1747
    %1749 = vmatpush1.msra.mxu0 %v1748
    %1750 = vmatprep.subr.mxu0 0.0
    %v1751 = vand.u32 %v36, 4294901760
    %v1752 = vsub.f32 %v36, %v1751
    %1753 = vmatpush1.msra.mxu0 %v1752
    %1754 = vmatprep.subr.mxu0 0.0
    %v1755 = vand.u32 %v35, 4294901760
    %v1756 = vsub.f32 %v35, %v1755
    %1757 = vmatpush1.msra.mxu0 %v1756
    %1758 = vmatprep.subr.mxu0 0.0
    %v1759 = vand.u32 %v34, 4294901760
    %v1760 = vsub.f32 %v34, %v1759
    %1761 = vmatpush1.msra.mxu0 %v1760
    %1762 = vmatprep.subr.mxu0 0.0
    %v1763 = vand.u32 %v33, 4294901760
    %v1764 = vsub.f32 %v33, %v1763
    %1765 = vmatpush1.msra.mxu0 %v1764
    %1766 = vmatprep.subr.mxu0 0.0
    %v1767 = vand.u32 %v32, 4294901760
    %v1768 = vsub.f32 %v32, %v1767
    %1769 = vmatpush1.msra.mxu0 %v1768
    %1770 = vmatprep.subr.mxu0 0.0
    %1771 = vmatpush2.msra.mxu0 0.0
    %1772 = vmatprep.subr.mxu0 0.0
    %1773 = vmatpush2.msra.mxu0 0.0
    %1774 = vmatprep.subr.mxu0 0.0
    %1775 = vmatpush2.msra.mxu0 0.0
    %1776 = vmatprep.subr.mxu0 0.0
    %1777 = vmatpush2.msra.mxu0 0.0
    %1778 = vmatprep.subr.mxu0 0.0
    %1779 = vmatpush2.msra.mxu0 0.0
    %1780 = vmatprep.subr.mxu0 0.0
    %1781 = vmatpush2.msra.mxu0 0.0
    %1782 = vmatprep.subr.mxu0 0.0
    %1783 = vmatpush2.msra.mxu0 0.0
    %1784 = vmatprep.subr.mxu0 0.0
    %1785 = vmatpush2.msra.mxu0 0.0
    %1786 = vmatprep.subr.mxu0 0.0
    %1787 = vmatpush2.msra.mxu0 0.0
    %1788 = vmatprep.subr.mxu0 0.0
    %1789 = vmatpush2.msra.mxu0 0.0
    %1790 = vmatprep.subr.mxu0 0.0
    %1791 = vmatpush2.msra.mxu0 0.0
    %1792 = vmatprep.subr.mxu0 0.0
    %1793 = vmatpush2.msra.mxu0 0.0
    %1794 = vmatprep.subr.mxu0 0.0
    %1795 = vmatpush2.msra.mxu0 0.0
    %1796 = vmatprep.subr.mxu0 0.0
    %1797 = vmatpush2.msra.mxu0 0.0
    %1798 = vmatprep.subr.mxu0 0.0
    %1799 = vmatpush2.msra.mxu0 0.0
    %1800 = vmatprep.subr.mxu0 0.0
    %1801 = vmatpush2.msra.mxu0 0.0
    %1802 = vmatprep.mubr.f32.mxu0 0.0
    %v1803 = vand.u32 %v1193, 4294901760
    %v1804 = vsub.f32 %v1193, %v1803
    %1805 = vmatmul.mubr.f32.gmra.mxu0 %v1804
    %v1806 = vpop.f32.mrf.mxu0
    %v1807 = vadd.f32 %v1613, %v1806
    %v1808 = vpop.f32.mrf.mxu0
    %1809 = vmatprep.mubr.f32.mxu0 0.0
    %v1810 = vand.u32 %v1195, 4294901760
    %v1811 = vsub.f32 %v1195, %v1810
    %1812 = vmatmul.mubr.f32.gmra.mxu0 %v1811
    %v1813 = vpop.f32.mrf.mxu0
    %v1814 = vadd.f32 %v1619, %v1813
    %v1815 = vpop.f32.mrf.mxu0
    %1816 = vmatprep.mubr.f32.mxu0 0.0
    %v1817 = vand.u32 %v1197, 4294901760
    %v1818 = vsub.f32 %v1197, %v1817
    %1819 = vmatmul.mubr.f32.gmra.mxu0 %v1818
    %v1820 = vpop.f32.mrf.mxu0
    %v1821 = vadd.f32 %v1625, %v1820
    %v1822 = vpop.f32.mrf.mxu0
    %1823 = vmatprep.mubr.f32.mxu0 0.0
    %v1824 = vand.u32 %v1199, 4294901760
    %v1825 = vsub.f32 %v1199, %v1824
    %1826 = vmatmul.mubr.f32.gmra.mxu0 %v1825
    %v1827 = vpop.f32.mrf.mxu0
    %v1828 = vadd.f32 %v1631, %v1827
    %v1829 = vpop.f32.mrf.mxu0
    %1830 = vmatprep.mubr.f32.mxu0 0.0
    %v1831 = vand.u32 %v1201, 4294901760
    %v1832 = vsub.f32 %v1201, %v1831
    %1833 = vmatmul.mubr.f32.gmra.mxu0 %v1832
    %v1834 = vpop.f32.mrf.mxu0
    %v1835 = vadd.f32 %v1637, %v1834
    %v1836 = vpop.f32.mrf.mxu0
    %1837 = vmatprep.mubr.f32.mxu0 0.0
    %v1838 = vand.u32 %v1203, 4294901760
    %v1839 = vsub.f32 %v1203, %v1838
    %1840 = vmatmul.mubr.f32.gmra.mxu0 %v1839
    %v1841 = vpop.f32.mrf.mxu0
    %v1842 = vadd.f32 %v1643, %v1841
    %v1843 = vpop.f32.mrf.mxu0
    %1844 = vmatprep.mubr.f32.mxu0 0.0
    %v1845 = vand.u32 %v1205, 4294901760
    %v1846 = vsub.f32 %v1205, %v1845
    %1847 = vmatmul.mubr.f32.gmra.mxu0 %v1846
    %v1848 = vpop.f32.mrf.mxu0
    %v1849 = vadd.f32 %v1649, %v1848
    %v1850 = vpop.f32.mrf.mxu0
    %1851 = vmatprep.mubr.f32.mxu0 0.0
    %v1852 = vand.u32 %v1207, 4294901760
    %v1853 = vsub.f32 %v1207, %v1852
    %1854 = vmatmul.mubr.f32.gmra.mxu0 %v1853
    %v1855 = vpop.f32.mrf.mxu0
    %v1856 = vadd.f32 %v1655, %v1855
    %v1857 = vpop.f32.mrf.mxu0
    %1858 = vmatprep.mubr.f32.mxu0 0.0
    %v1859 = vand.u32 %v1209, 4294901760
    %v1860 = vsub.f32 %v1209, %v1859
    %1861 = vmatmul.mubr.f32.gmra.mxu0 %v1860
    %v1862 = vpop.f32.mrf.mxu0
    %v1863 = vadd.f32 %v1661, %v1862
    %v1864 = vpop.f32.mrf.mxu0
    %1865 = vmatprep.mubr.f32.mxu0 0.0
    %v1866 = vand.u32 %v1211, 4294901760
    %v1867 = vsub.f32 %v1211, %v1866
    %1868 = vmatmul.mubr.f32.gmra.mxu0 %v1867
    %v1869 = vpop.f32.mrf.mxu0
    %v1870 = vadd.f32 %v1667, %v1869
    %v1871 = vpop.f32.mrf.mxu0
    %1872 = vmatprep.mubr.f32.mxu0 0.0
    %v1873 = vand.u32 %v1213, 4294901760
    %v1874 = vsub.f32 %v1213, %v1873
    %1875 = vmatmul.mubr.f32.gmra.mxu0 %v1874
    %v1876 = vpop.f32.mrf.mxu0
    %v1877 = vadd.f32 %v1673, %v1876
    %v1878 = vpop.f32.mrf.mxu0
    %1879 = vmatprep.mubr.f32.mxu0 0.0
    %v1880 = vand.u32 %v1215, 4294901760
    %v1881 = vsub.f32 %v1215, %v1880
    %1882 = vmatmul.mubr.f32.gmra.mxu0 %v1881
    %v1883 = vpop.f32.mrf.mxu0
    %v1884 = vadd.f32 %v1679, %v1883
    %v1885 = vpop.f32.mrf.mxu0
    %1886 = vmatprep.mubr.f32.mxu0 0.0
    %v1887 = vand.u32 %v1217, 4294901760
    %v1888 = vsub.f32 %v1217, %v1887
    %1889 = vmatmul.mubr.f32.gmra.mxu0 %v1888
    %v1890 = vpop.f32.mrf.mxu0
    %v1891 = vadd.f32 %v1685, %v1890
    %v1892 = vpop.f32.mrf.mxu0
    %1893 = vmatprep.mubr.f32.mxu0 0.0
    %v1894 = vand.u32 %v1219, 4294901760
    %v1895 = vsub.f32 %v1219, %v1894
    %1896 = vmatmul.mubr.f32.gmra.mxu0 %v1895
    %v1897 = vpop.f32.mrf.mxu0
    %v1898 = vadd.f32 %v1691, %v1897
    %v1899 = vpop.f32.mrf.mxu0
    %1900 = vmatprep.mubr.f32.mxu0 0.0
    %v1901 = vand.u32 %v1221, 4294901760
    %v1902 = vsub.f32 %v1221, %v1901
    %1903 = vmatmul.mubr.f32.gmra.mxu0 %v1902
    %v1904 = vpop.f32.mrf.mxu0
    %v1905 = vadd.f32 %v1697, %v1904
    %v1906 = vpop.f32.mrf.mxu0
    %1907 = vmatprep.mubr.f32.mxu0 0.0
    %v1908 = vand.u32 %v1223, 4294901760
    %v1909 = vsub.f32 %v1223, %v1908
    %1910 = vmatmul.mubr.f32.gmra.mxu0 %v1909
    %v1911 = vpop.f32.mrf.mxu0
    %v1912 = vadd.f32 %v1703, %v1911
    %v1913 = vpop.f32.mrf.mxu0
    %1914 = vdwg.mxu0
    %1915 = vmatprep.subr.mxu0 0.0
    %v1916 = vand.u32 %v47, 4294901760
    %1917 = vmatpush1.msra.mxu0 %v1916
    %1918 = vmatprep.subr.mxu0 0.0
    %v1919 = vand.u32 %v46, 4294901760
    %1920 = vmatpush1.msra.mxu0 %v1919
    %1921 = vmatprep.subr.mxu0 0.0
    %v1922 = vand.u32 %v45, 4294901760
    %1923 = vmatpush1.msra.mxu0 %v1922
    %1924 = vmatprep.subr.mxu0 0.0
    %v1925 = vand.u32 %v44, 4294901760
    %1926 = vmatpush1.msra.mxu0 %v1925
    %1927 = vmatprep.subr.mxu0 0.0
    %v1928 = vand.u32 %v43, 4294901760
    %1929 = vmatpush1.msra.mxu0 %v1928
    %1930 = vmatprep.subr.mxu0 0.0
    %v1931 = vand.u32 %v42, 4294901760
    %1932 = vmatpush1.msra.mxu0 %v1931
    %1933 = vmatprep.subr.mxu0 0.0
    %v1934 = vand.u32 %v41, 4294901760
    %1935 = vmatpush1.msra.mxu0 %v1934
    %1936 = vmatprep.subr.mxu0 0.0
    %v1937 = vand.u32 %v40, 4294901760
    %1938 = vmatpush1.msra.mxu0 %v1937
    %1939 = vmatprep.subr.mxu0 0.0
    %v1940 = vand.u32 %v39, 4294901760
    %1941 = vmatpush1.msra.mxu0 %v1940
    %1942 = vmatprep.subr.mxu0 0.0
    %v1943 = vand.u32 %v38, 4294901760
    %1944 = vmatpush1.msra.mxu0 %v1943
    %1945 = vmatprep.subr.mxu0 0.0
    %v1946 = vand.u32 %v37, 4294901760
    %1947 = vmatpush1.msra.mxu0 %v1946
    %1948 = vmatprep.subr.mxu0 0.0
    %v1949 = vand.u32 %v36, 4294901760
    %1950 = vmatpush1.msra.mxu0 %v1949
    %1951 = vmatprep.subr.mxu0 0.0
    %v1952 = vand.u32 %v35, 4294901760
    %1953 = vmatpush1.msra.mxu0 %v1952
    %1954 = vmatprep.subr.mxu0 0.0
    %v1955 = vand.u32 %v34, 4294901760
    %1956 = vmatpush1.msra.mxu0 %v1955
    %1957 = vmatprep.subr.mxu0 0.0
    %v1958 = vand.u32 %v33, 4294901760
    %1959 = vmatpush1.msra.mxu0 %v1958
    %1960 = vmatprep.subr.mxu0 0.0
    %v1961 = vand.u32 %v32, 4294901760
    %1962 = vmatpush1.msra.mxu0 %v1961
    %1963 = vmatprep.subr.mxu0 0.0
    %1964 = vmatpush2.msra.mxu0 0.0
    %1965 = vmatprep.subr.mxu0 0.0
    %1966 = vmatpush2.msra.mxu0 0.0
    %1967 = vmatprep.subr.mxu0 0.0
    %1968 = vmatpush2.msra.mxu0 0.0
    %1969 = vmatprep.subr.mxu0 0.0
    %1970 = vmatpush2.msra.mxu0 0.0
    %1971 = vmatprep.subr.mxu0 0.0
    %1972 = vmatpush2.msra.mxu0 0.0
    %1973 = vmatprep.subr.mxu0 0.0
    %1974 = vmatpush2.msra.mxu0 0.0
    %1975 = vmatprep.subr.mxu0 0.0
    %1976 = vmatpush2.msra.mxu0 0.0
    %1977 = vmatprep.subr.mxu0 0.0
    %1978 = vmatpush2.msra.mxu0 0.0
    %1979 = vmatprep.subr.mxu0 0.0
    %1980 = vmatpush2.msra.mxu0 0.0
    %1981 = vmatprep.subr.mxu0 0.0
    %1982 = vmatpush2.msra.mxu0 0.0
    %1983 = vmatprep.subr.mxu0 0.0
    %1984 = vmatpush2.msra.mxu0 0.0
    %1985 = vmatprep.subr.mxu0 0.0
    %1986 = vmatpush2.msra.mxu0 0.0
    %1987 = vmatprep.subr.mxu0 0.0
    %1988 = vmatpush2.msra.mxu0 0.0
    %1989 = vmatprep.subr.mxu0 0.0
    %1990 = vmatpush2.msra.mxu0 0.0
    %1991 = vmatprep.subr.mxu0 0.0
    %1992 = vmatpush2.msra.mxu0 0.0
    %1993 = vmatprep.subr.mxu0 0.0
    %1994 = vmatpush2.msra.mxu0 0.0
    %1995 = vmatprep.mubr.f32.mxu0 0.0
    %v1996 = vand.u32 %v1193, 4294901760
    %v1997 = vsub.f32 %v1193, %v1996
    %v1998 = vand.u32 %v1997, 4294901760
    %1999 = vmatmul.mubr.f32.gmra.mxu0 %v1998
    %v2000 = vpop.f32.mrf.mxu0
    %v2001 = vadd.f32 %v1807, %v2000
    %v2002 = vpop.f32.mrf.mxu0
    %2003 = vmatprep.mubr.f32.mxu0 0.0
    %v2004 = vand.u32 %v1195, 4294901760
    %v2005 = vsub.f32 %v1195, %v2004
    %v2006 = vand.u32 %v2005, 4294901760
    %2007 = vmatmul.mubr.f32.gmra.mxu0 %v2006
    %v2008 = vpop.f32.mrf.mxu0
    %v2009 = vadd.f32 %v1814, %v2008
    %v2010 = vpop.f32.mrf.mxu0
    %2011 = vmatprep.mubr.f32.mxu0 0.0
    %v2012 = vand.u32 %v1197, 4294901760
    %v2013 = vsub.f32 %v1197, %v2012
    %v2014 = vand.u32 %v2013, 4294901760
    %2015 = vmatmul.mubr.f32.gmra.mxu0 %v2014
    %v2016 = vpop.f32.mrf.mxu0
    %v2017 = vadd.f32 %v1821, %v2016
    %v2018 = vpop.f32.mrf.mxu0
    %2019 = vmatprep.mubr.f32.mxu0 0.0
    %v2020 = vand.u32 %v1199, 4294901760
    %v2021 = vsub.f32 %v1199, %v2020
    %v2022 = vand.u32 %v2021, 4294901760
    %2023 = vmatmul.mubr.f32.gmra.mxu0 %v2022
    %v2024 = vpop.f32.mrf.mxu0
    %v2025 = vadd.f32 %v1828, %v2024
    %v2026 = vpop.f32.mrf.mxu0
    %2027 = vmatprep.mubr.f32.mxu0 0.0
    %v2028 = vand.u32 %v1201, 4294901760
    %v2029 = vsub.f32 %v1201, %v2028
    %v2030 = vand.u32 %v2029, 4294901760
    %2031 = vmatmul.mubr.f32.gmra.mxu0 %v2030
    %v2032 = vpop.f32.mrf.mxu0
    %v2033 = vadd.f32 %v1835, %v2032
    %v2034 = vpop.f32.mrf.mxu0
    %2035 = vmatprep.mubr.f32.mxu0 0.0
    %v2036 = vand.u32 %v1203, 4294901760
    %v2037 = vsub.f32 %v1203, %v2036
    %v2038 = vand.u32 %v2037, 4294901760
    %2039 = vmatmul.mubr.f32.gmra.mxu0 %v2038
    %v2040 = vpop.f32.mrf.mxu0
    %v2041 = vadd.f32 %v1842, %v2040
    %v2042 = vpop.f32.mrf.mxu0
    %2043 = vmatprep.mubr.f32.mxu0 0.0
    %v2044 = vand.u32 %v1205, 4294901760
    %v2045 = vsub.f32 %v1205, %v2044
    %v2046 = vand.u32 %v2045, 4294901760
    %2047 = vmatmul.mubr.f32.gmra.mxu0 %v2046
    %v2048 = vpop.f32.mrf.mxu0
    %v2049 = vadd.f32 %v1849, %v2048
    %v2050 = vpop.f32.mrf.mxu0
    %2051 = vmatprep.mubr.f32.mxu0 0.0
    %v2052 = vand.u32 %v1207, 4294901760
    %v2053 = vsub.f32 %v1207, %v2052
    %v2054 = vand.u32 %v2053, 4294901760
    %2055 = vmatmul.mubr.f32.gmra.mxu0 %v2054
    %v2056 = vpop.f32.mrf.mxu0
    %v2057 = vadd.f32 %v1856, %v2056
    %v2058 = vpop.f32.mrf.mxu0
    %2059 = vmatprep.mubr.f32.mxu0 0.0
    %v2060 = vand.u32 %v1209, 4294901760
    %v2061 = vsub.f32 %v1209, %v2060
    %v2062 = vand.u32 %v2061, 4294901760
    %2063 = vmatmul.mubr.f32.gmra.mxu0 %v2062
    %v2064 = vpop.f32.mrf.mxu0
    %v2065 = vadd.f32 %v1863, %v2064
    %v2066 = vpop.f32.mrf.mxu0
    %2067 = vmatprep.mubr.f32.mxu0 0.0
    %v2068 = vand.u32 %v1211, 4294901760
    %v2069 = vsub.f32 %v1211, %v2068
    %v2070 = vand.u32 %v2069, 4294901760
    %2071 = vmatmul.mubr.f32.gmra.mxu0 %v2070
    %v2072 = vpop.f32.mrf.mxu0
    %v2073 = vadd.f32 %v1870, %v2072
    %v2074 = vpop.f32.mrf.mxu0
    %2075 = vmatprep.mubr.f32.mxu0 0.0
    %v2076 = vand.u32 %v1213, 4294901760
    %v2077 = vsub.f32 %v1213, %v2076
    %v2078 = vand.u32 %v2077, 4294901760
    %2079 = vmatmul.mubr.f32.gmra.mxu0 %v2078
    %v2080 = vpop.f32.mrf.mxu0
    %v2081 = vadd.f32 %v1877, %v2080
    %v2082 = vpop.f32.mrf.mxu0
    %2083 = vmatprep.mubr.f32.mxu0 0.0
    %v2084 = vand.u32 %v1215, 4294901760
    %v2085 = vsub.f32 %v1215, %v2084
    %v2086 = vand.u32 %v2085, 4294901760
    %2087 = vmatmul.mubr.f32.gmra.mxu0 %v2086
    %v2088 = vpop.f32.mrf.mxu0
    %v2089 = vadd.f32 %v1884, %v2088
    %v2090 = vpop.f32.mrf.mxu0
    %2091 = vmatprep.mubr.f32.mxu0 0.0
    %v2092 = vand.u32 %v1217, 4294901760
    %v2093 = vsub.f32 %v1217, %v2092
    %v2094 = vand.u32 %v2093, 4294901760
    %2095 = vmatmul.mubr.f32.gmra.mxu0 %v2094
    %v2096 = vpop.f32.mrf.mxu0
    %v2097 = vadd.f32 %v1891, %v2096
    %v2098 = vpop.f32.mrf.mxu0
    %2099 = vmatprep.mubr.f32.mxu0 0.0
    %v2100 = vand.u32 %v1219, 4294901760
    %v2101 = vsub.f32 %v1219, %v2100
    %v2102 = vand.u32 %v2101, 4294901760
    %2103 = vmatmul.mubr.f32.gmra.mxu0 %v2102
    %v2104 = vpop.f32.mrf.mxu0
    %v2105 = vadd.f32 %v1898, %v2104
    %v2106 = vpop.f32.mrf.mxu0
    %2107 = vmatprep.mubr.f32.mxu0 0.0
    %v2108 = vand.u32 %v1221, 4294901760
    %v2109 = vsub.f32 %v1221, %v2108
    %v2110 = vand.u32 %v2109, 4294901760
    %2111 = vmatmul.mubr.f32.gmra.mxu0 %v2110
    %v2112 = vpop.f32.mrf.mxu0
    %v2113 = vadd.f32 %v1905, %v2112
    %v2114 = vpop.f32.mrf.mxu0
    %2115 = vmatprep.mubr.f32.mxu0 0.0
    %v2116 = vand.u32 %v1223, 4294901760
    %v2117 = vsub.f32 %v1223, %v2116
    %v2118 = vand.u32 %v2117, 4294901760
    %2119 = vmatmul.mubr.f32.gmra.mxu0 %v2118
    %v2120 = vpop.f32.mrf.mxu0
    %v2121 = vadd.f32 %v1912, %v2120
    %v2122 = vpop.f32.mrf.mxu0
    %2123 = vdwg.mxu0
    %2124 = vmatprep.subr.mxu0 0.0
    %v2125 = vand.u32 %v47, 4294901760
    %v2126 = vsub.f32 %v47, %v2125
    %v2127 = vand.u32 %v2126, 4294901760
    %2128 = vmatpush1.msra.mxu0 %v2127
    %2129 = vmatprep.subr.mxu0 0.0
    %v2130 = vand.u32 %v46, 4294901760
    %v2131 = vsub.f32 %v46, %v2130
    %v2132 = vand.u32 %v2131, 4294901760
    %2133 = vmatpush1.msra.mxu0 %v2132
    %2134 = vmatprep.subr.mxu0 0.0
    %v2135 = vand.u32 %v45, 4294901760
    %v2136 = vsub.f32 %v45, %v2135
    %v2137 = vand.u32 %v2136, 4294901760
    %2138 = vmatpush1.msra.mxu0 %v2137
    %2139 = vmatprep.subr.mxu0 0.0
    %v2140 = vand.u32 %v44, 4294901760
    %v2141 = vsub.f32 %v44, %v2140
    %v2142 = vand.u32 %v2141, 4294901760
    %2143 = vmatpush1.msra.mxu0 %v2142
    %2144 = vmatprep.subr.mxu0 0.0
    %v2145 = vand.u32 %v43, 4294901760
    %v2146 = vsub.f32 %v43, %v2145
    %v2147 = vand.u32 %v2146, 4294901760
    %2148 = vmatpush1.msra.mxu0 %v2147
    %2149 = vmatprep.subr.mxu0 0.0
    %v2150 = vand.u32 %v42, 4294901760
    %v2151 = vsub.f32 %v42, %v2150
    %v2152 = vand.u32 %v2151, 4294901760
    %2153 = vmatpush1.msra.mxu0 %v2152
    %2154 = vmatprep.subr.mxu0 0.0
    %v2155 = vand.u32 %v41, 4294901760
    %v2156 = vsub.f32 %v41, %v2155
    %v2157 = vand.u32 %v2156, 4294901760
    %2158 = vmatpush1.msra.mxu0 %v2157
    %2159 = vmatprep.subr.mxu0 0.0
    %v2160 = vand.u32 %v40, 4294901760
    %v2161 = vsub.f32 %v40, %v2160
    %v2162 = vand.u32 %v2161, 4294901760
    %2163 = vmatpush1.msra.mxu0 %v2162
    %2164 = vmatprep.subr.mxu0 0.0
    %v2165 = vand.u32 %v39, 4294901760
    %v2166 = vsub.f32 %v39, %v2165
    %v2167 = vand.u32 %v2166, 4294901760
    %2168 = vmatpush1.msra.mxu0 %v2167
    %2169 = vmatprep.subr.mxu0 0.0
    %v2170 = vand.u32 %v38, 4294901760
    %v2171 = vsub.f32 %v38, %v2170
    %v2172 = vand.u32 %v2171, 4294901760
    %2173 = vmatpush1.msra.mxu0 %v2172
    %2174 = vmatprep.subr.mxu0 0.0
    %v2175 = vand.u32 %v37, 4294901760
    %v2176 = vsub.f32 %v37, %v2175
    %v2177 = vand.u32 %v2176, 4294901760
    %2178 = vmatpush1.msra.mxu0 %v2177
    %2179 = vmatprep.subr.mxu0 0.0
    %v2180 = vand.u32 %v36, 4294901760
    %v2181 = vsub.f32 %v36, %v2180
    %v2182 = vand.u32 %v2181, 4294901760
    %2183 = vmatpush1.msra.mxu0 %v2182
    %2184 = vmatprep.subr.mxu0 0.0
    %v2185 = vand.u32 %v35, 4294901760
    %v2186 = vsub.f32 %v35, %v2185
    %v2187 = vand.u32 %v2186, 4294901760
    %2188 = vmatpush1.msra.mxu0 %v2187
    %2189 = vmatprep.subr.mxu0 0.0
    %v2190 = vand.u32 %v34, 4294901760
    %v2191 = vsub.f32 %v34, %v2190
    %v2192 = vand.u32 %v2191, 4294901760
    %2193 = vmatpush1.msra.mxu0 %v2192
    %2194 = vmatprep.subr.mxu0 0.0
    %v2195 = vand.u32 %v33, 4294901760
    %v2196 = vsub.f32 %v33, %v2195
    %v2197 = vand.u32 %v2196, 4294901760
    %2198 = vmatpush1.msra.mxu0 %v2197
    %2199 = vmatprep.subr.mxu0 0.0
    %v2200 = vand.u32 %v32, 4294901760
    %v2201 = vsub.f32 %v32, %v2200
    %v2202 = vand.u32 %v2201, 4294901760
    %2203 = vmatpush1.msra.mxu0 %v2202
    %2204 = vmatprep.subr.mxu0 0.0
    %2205 = vmatpush2.msra.mxu0 0.0
    %2206 = vmatprep.subr.mxu0 0.0
    %2207 = vmatpush2.msra.mxu0 0.0
    %2208 = vmatprep.subr.mxu0 0.0
    %2209 = vmatpush2.msra.mxu0 0.0
    %2210 = vmatprep.subr.mxu0 0.0
    %2211 = vmatpush2.msra.mxu0 0.0
    %2212 = vmatprep.subr.mxu0 0.0
    %2213 = vmatpush2.msra.mxu0 0.0
    %2214 = vmatprep.subr.mxu0 0.0
    %2215 = vmatpush2.msra.mxu0 0.0
    %2216 = vmatprep.subr.mxu0 0.0
    %2217 = vmatpush2.msra.mxu0 0.0
    %2218 = vmatprep.subr.mxu0 0.0
    %2219 = vmatpush2.msra.mxu0 0.0
    %2220 = vmatprep.subr.mxu0 0.0
    %2221 = vmatpush2.msra.mxu0 0.0
    %2222 = vmatprep.subr.mxu0 0.0
    %2223 = vmatpush2.msra.mxu0 0.0
    %2224 = vmatprep.subr.mxu0 0.0
    %2225 = vmatpush2.msra.mxu0 0.0
    %2226 = vmatprep.subr.mxu0 0.0
    %2227 = vmatpush2.msra.mxu0 0.0
    %2228 = vmatprep.subr.mxu0 0.0
    %2229 = vmatpush2.msra.mxu0 0.0
    %2230 = vmatprep.subr.mxu0 0.0
    %2231 = vmatpush2.msra.mxu0 0.0
    %2232 = vmatprep.subr.mxu0 0.0
    %2233 = vmatpush2.msra.mxu0 0.0
    %2234 = vmatprep.subr.mxu0 0.0
    %2235 = vmatpush2.msra.mxu0 0.0
    %2236 = vmatprep.mubr.f32.mxu0 0.0
    %v2237 = vand.u32 %v1193, 4294901760
    %2238 = vmatmul.mubr.f32.gmra.mxu0 %v2237
    %v2239 = vpop.f32.mrf.mxu0
    %v2240 = vadd.f32 %v2001, %v2239
    %v2241 = vpop.f32.mrf.mxu0
    %2242 = vmatprep.mubr.f32.mxu0 0.0
    %v2243 = vand.u32 %v1195, 4294901760
    %2244 = vmatmul.mubr.f32.gmra.mxu0 %v2243
    %v2245 = vpop.f32.mrf.mxu0
    %v2246 = vadd.f32 %v2009, %v2245
    %v2247 = vpop.f32.mrf.mxu0
    %2248 = vmatprep.mubr.f32.mxu0 0.0
    %v2249 = vand.u32 %v1197, 4294901760
    %2250 = vmatmul.mubr.f32.gmra.mxu0 %v2249
    %v2251 = vpop.f32.mrf.mxu0
    %v2252 = vadd.f32 %v2017, %v2251
    %v2253 = vpop.f32.mrf.mxu0
    %2254 = vmatprep.mubr.f32.mxu0 0.0
    %v2255 = vand.u32 %v1199, 4294901760
    %2256 = vmatmul.mubr.f32.gmra.mxu0 %v2255
    %v2257 = vpop.f32.mrf.mxu0
    %v2258 = vadd.f32 %v2025, %v2257
    %v2259 = vpop.f32.mrf.mxu0
    %2260 = vmatprep.mubr.f32.mxu0 0.0
    %v2261 = vand.u32 %v1201, 4294901760
    %2262 = vmatmul.mubr.f32.gmra.mxu0 %v2261
    %v2263 = vpop.f32.mrf.mxu0
    %v2264 = vadd.f32 %v2033, %v2263
    %v2265 = vpop.f32.mrf.mxu0
    %2266 = vmatprep.mubr.f32.mxu0 0.0
    %v2267 = vand.u32 %v1203, 4294901760
    %2268 = vmatmul.mubr.f32.gmra.mxu0 %v2267
    %v2269 = vpop.f32.mrf.mxu0
    %v2270 = vadd.f32 %v2041, %v2269
    %v2271 = vpop.f32.mrf.mxu0
    %2272 = vmatprep.mubr.f32.mxu0 0.0
    %v2273 = vand.u32 %v1205, 4294901760
    %2274 = vmatmul.mubr.f32.gmra.mxu0 %v2273
    %v2275 = vpop.f32.mrf.mxu0
    %v2276 = vadd.f32 %v2049, %v2275
    %v2277 = vpop.f32.mrf.mxu0
    %2278 = vmatprep.mubr.f32.mxu0 0.0
    %v2279 = vand.u32 %v1207, 4294901760
    %2280 = vmatmul.mubr.f32.gmra.mxu0 %v2279
    %v2281 = vpop.f32.mrf.mxu0
    %v2282 = vadd.f32 %v2057, %v2281
    %v2283 = vpop.f32.mrf.mxu0
    %2284 = vmatprep.mubr.f32.mxu0 0.0
    %v2285 = vand.u32 %v1209, 4294901760
    %2286 = vmatmul.mubr.f32.gmra.mxu0 %v2285
    %v2287 = vpop.f32.mrf.mxu0
    %v2288 = vadd.f32 %v2065, %v2287
    %v2289 = vpop.f32.mrf.mxu0
    %2290 = vmatprep.mubr.f32.mxu0 0.0
    %v2291 = vand.u32 %v1211, 4294901760
    %2292 = vmatmul.mubr.f32.gmra.mxu0 %v2291
    %v2293 = vpop.f32.mrf.mxu0
    %v2294 = vadd.f32 %v2073, %v2293
    %v2295 = vpop.f32.mrf.mxu0
    %2296 = vmatprep.mubr.f32.mxu0 0.0
    %v2297 = vand.u32 %v1213, 4294901760
    %2298 = vmatmul.mubr.f32.gmra.mxu0 %v2297
    %v2299 = vpop.f32.mrf.mxu0
    %v2300 = vadd.f32 %v2081, %v2299
    %v2301 = vpop.f32.mrf.mxu0
    %2302 = vmatprep.mubr.f32.mxu0 0.0
    %v2303 = vand.u32 %v1215, 4294901760
    %2304 = vmatmul.mubr.f32.gmra.mxu0 %v2303
    %v2305 = vpop.f32.mrf.mxu0
    %v2306 = vadd.f32 %v2089, %v2305
    %v2307 = vpop.f32.mrf.mxu0
    %2308 = vmatprep.mubr.f32.mxu0 0.0
    %v2309 = vand.u32 %v1217, 4294901760
    %2310 = vmatmul.mubr.f32.gmra.mxu0 %v2309
    %v2311 = vpop.f32.mrf.mxu0
    %v2312 = vadd.f32 %v2097, %v2311
    %v2313 = vpop.f32.mrf.mxu0
    %2314 = vmatprep.mubr.f32.mxu0 0.0
    %v2315 = vand.u32 %v1219, 4294901760
    %2316 = vmatmul.mubr.f32.gmra.mxu0 %v2315
    %v2317 = vpop.f32.mrf.mxu0
    %v2318 = vadd.f32 %v2105, %v2317
    %v2319 = vpop.f32.mrf.mxu0
    %2320 = vmatprep.mubr.f32.mxu0 0.0
    %v2321 = vand.u32 %v1221, 4294901760
    %2322 = vmatmul.mubr.f32.gmra.mxu0 %v2321
    %v2323 = vpop.f32.mrf.mxu0
    %v2324 = vadd.f32 %v2113, %v2323
    %v2325 = vpop.f32.mrf.mxu0
    %2326 = vmatprep.mubr.f32.mxu0 0.0
    %v2327 = vand.u32 %v1223, 4294901760
    %2328 = vmatmul.mubr.f32.gmra.mxu0 %v2327
    %v2329 = vpop.f32.mrf.mxu0
    %v2330 = vadd.f32 %v2121, %v2329
    %v2331 = vpop.f32.mrf.mxu0
    %2332 = vdwg.mxu0
    %2333 = vmatprep.subr.mxu0 0.0
    %v2334 = vand.u32 %v47, 4294901760
    %2335 = vmatpush1.msra.mxu0 %v2334
    %2336 = vmatprep.subr.mxu0 0.0
    %v2337 = vand.u32 %v46, 4294901760
    %2338 = vmatpush1.msra.mxu0 %v2337
    %2339 = vmatprep.subr.mxu0 0.0
    %v2340 = vand.u32 %v45, 4294901760
    %2341 = vmatpush1.msra.mxu0 %v2340
    %2342 = vmatprep.subr.mxu0 0.0
    %v2343 = vand.u32 %v44, 4294901760
    %2344 = vmatpush1.msra.mxu0 %v2343
    %2345 = vmatprep.subr.mxu0 0.0
    %v2346 = vand.u32 %v43, 4294901760
    %2347 = vmatpush1.msra.mxu0 %v2346
    %2348 = vmatprep.subr.mxu0 0.0
    %v2349 = vand.u32 %v42, 4294901760
    %2350 = vmatpush1.msra.mxu0 %v2349
    %2351 = vmatprep.subr.mxu0 0.0
    %v2352 = vand.u32 %v41, 4294901760
    %2353 = vmatpush1.msra.mxu0 %v2352
    %2354 = vmatprep.subr.mxu0 0.0
    %v2355 = vand.u32 %v40, 4294901760
    %2356 = vmatpush1.msra.mxu0 %v2355
    %2357 = vmatprep.subr.mxu0 0.0
    %v2358 = vand.u32 %v39, 4294901760
    %2359 = vmatpush1.msra.mxu0 %v2358
    %2360 = vmatprep.subr.mxu0 0.0
    %v2361 = vand.u32 %v38, 4294901760
    %2362 = vmatpush1.msra.mxu0 %v2361
    %2363 = vmatprep.subr.mxu0 0.0
    %v2364 = vand.u32 %v37, 4294901760
    %2365 = vmatpush1.msra.mxu0 %v2364
    %2366 = vmatprep.subr.mxu0 0.0
    %v2367 = vand.u32 %v36, 4294901760
    %2368 = vmatpush1.msra.mxu0 %v2367
    %2369 = vmatprep.subr.mxu0 0.0
    %v2370 = vand.u32 %v35, 4294901760
    %2371 = vmatpush1.msra.mxu0 %v2370
    %2372 = vmatprep.subr.mxu0 0.0
    %v2373 = vand.u32 %v34, 4294901760
    %2374 = vmatpush1.msra.mxu0 %v2373
    %2375 = vmatprep.subr.mxu0 0.0
    %v2376 = vand.u32 %v33, 4294901760
    %2377 = vmatpush1.msra.mxu0 %v2376
    %2378 = vmatprep.subr.mxu0 0.0
    %v2379 = vand.u32 %v32, 4294901760
    %2380 = vmatpush1.msra.mxu0 %v2379
    %2381 = vmatprep.subr.mxu0 0.0
    %2382 = vmatpush2.msra.mxu0 0.0
    %2383 = vmatprep.subr.mxu0 0.0
    %2384 = vmatpush2.msra.mxu0 0.0
    %2385 = vmatprep.subr.mxu0 0.0
    %2386 = vmatpush2.msra.mxu0 0.0
    %2387 = vmatprep.subr.mxu0 0.0
    %2388 = vmatpush2.msra.mxu0 0.0
    %2389 = vmatprep.subr.mxu0 0.0
    %2390 = vmatpush2.msra.mxu0 0.0
    %2391 = vmatprep.subr.mxu0 0.0
    %2392 = vmatpush2.msra.mxu0 0.0
    %2393 = vmatprep.subr.mxu0 0.0
    %2394 = vmatpush2.msra.mxu0 0.0
    %2395 = vmatprep.subr.mxu0 0.0
    %2396 = vmatpush2.msra.mxu0 0.0
    %2397 = vmatprep.subr.mxu0 0.0
    %2398 = vmatpush2.msra.mxu0 0.0
    %2399 = vmatprep.subr.mxu0 0.0
    %2400 = vmatpush2.msra.mxu0 0.0
    %2401 = vmatprep.subr.mxu0 0.0
    %2402 = vmatpush2.msra.mxu0 0.0
    %2403 = vmatprep.subr.mxu0 0.0
    %2404 = vmatpush2.msra.mxu0 0.0
    %2405 = vmatprep.subr.mxu0 0.0
    %2406 = vmatpush2.msra.mxu0 0.0
    %2407 = vmatprep.subr.mxu0 0.0
    %2408 = vmatpush2.msra.mxu0 0.0
    %2409 = vmatprep.subr.mxu0 0.0
    %2410 = vmatpush2.msra.mxu0 0.0
    %2411 = vmatprep.subr.mxu0 0.0
    %2412 = vmatpush2.msra.mxu0 0.0
    %2413 = vmatprep.mubr.f32.mxu0 0.0
    %v2414 = vand.u32 %v1193, 4294901760
    %2415 = vmatmul.mubr.f32.gmra.mxu0 %v2414
    %v2416 = vpop.f32.mrf.mxu0
    %v2417 = vadd.f32 %v2240, %v2416
    %v2418 = vpop.f32.mrf.mxu0
    %2419 = vmatprep.mubr.f32.mxu0 0.0
    %v2420 = vand.u32 %v1195, 4294901760
    %2421 = vmatmul.mubr.f32.gmra.mxu0 %v2420
    %v2422 = vpop.f32.mrf.mxu0
    %v2423 = vadd.f32 %v2246, %v2422
    %v2424 = vpop.f32.mrf.mxu0
    %2425 = vmatprep.mubr.f32.mxu0 0.0
    %v2426 = vand.u32 %v1197, 4294901760
    %2427 = vmatmul.mubr.f32.gmra.mxu0 %v2426
    %v2428 = vpop.f32.mrf.mxu0
    %v2429 = vadd.f32 %v2252, %v2428
    %v2430 = vpop.f32.mrf.mxu0
    %2431 = vmatprep.mubr.f32.mxu0 0.0
    %v2432 = vand.u32 %v1199, 4294901760
    %2433 = vmatmul.mubr.f32.gmra.mxu0 %v2432
    %v2434 = vpop.f32.mrf.mxu0
    %v2435 = vadd.f32 %v2258, %v2434
    %v2436 = vpop.f32.mrf.mxu0
    %2437 = vmatprep.mubr.f32.mxu0 0.0
    %v2438 = vand.u32 %v1201, 4294901760
    %2439 = vmatmul.mubr.f32.gmra.mxu0 %v2438
    %v2440 = vpop.f32.mrf.mxu0
    %v2441 = vadd.f32 %v2264, %v2440
    %v2442 = vpop.f32.mrf.mxu0
    %2443 = vmatprep.mubr.f32.mxu0 0.0
    %v2444 = vand.u32 %v1203, 4294901760
    %2445 = vmatmul.mubr.f32.gmra.mxu0 %v2444
    %v2446 = vpop.f32.mrf.mxu0
    %v2447 = vadd.f32 %v2270, %v2446
    %v2448 = vpop.f32.mrf.mxu0
    %2449 = vmatprep.mubr.f32.mxu0 0.0
    %v2450 = vand.u32 %v1205, 4294901760
    %2451 = vmatmul.mubr.f32.gmra.mxu0 %v2450
    %v2452 = vpop.f32.mrf.mxu0
    %v2453 = vadd.f32 %v2276, %v2452
    %v2454 = vpop.f32.mrf.mxu0
    %2455 = vmatprep.mubr.f32.mxu0 0.0
    %v2456 = vand.u32 %v1207, 4294901760
    %2457 = vmatmul.mubr.f32.gmra.mxu0 %v2456
    %v2458 = vpop.f32.mrf.mxu0
    %v2459 = vadd.f32 %v2282, %v2458
    %v2460 = vpop.f32.mrf.mxu0
    %2461 = vmatprep.mubr.f32.mxu0 0.0
    %v2462 = vand.u32 %v1209, 4294901760
    %2463 = vmatmul.mubr.f32.gmra.mxu0 %v2462
    %v2464 = vpop.f32.mrf.mxu0
    %v2465 = vadd.f32 %v2288, %v2464
    %v2466 = vpop.f32.mrf.mxu0
    %2467 = vmatprep.mubr.f32.mxu0 0.0
    %v2468 = vand.u32 %v1211, 4294901760
    %2469 = vmatmul.mubr.f32.gmra.mxu0 %v2468
    %v2470 = vpop.f32.mrf.mxu0
    %v2471 = vadd.f32 %v2294, %v2470
    %v2472 = vpop.f32.mrf.mxu0
    %2473 = vmatprep.mubr.f32.mxu0 0.0
    %v2474 = vand.u32 %v1213, 4294901760
    %2475 = vmatmul.mubr.f32.gmra.mxu0 %v2474
    %v2476 = vpop.f32.mrf.mxu0
    %v2477 = vadd.f32 %v2300, %v2476
    %v2478 = vpop.f32.mrf.mxu0
    %2479 = vmatprep.mubr.f32.mxu0 0.0
    %v2480 = vand.u32 %v1215, 4294901760
    %2481 = vmatmul.mubr.f32.gmra.mxu0 %v2480
    %v2482 = vpop.f32.mrf.mxu0
    %v2483 = vadd.f32 %v2306, %v2482
    %v2484 = vpop.f32.mrf.mxu0
    %2485 = vmatprep.mubr.f32.mxu0 0.0
    %v2486 = vand.u32 %v1217, 4294901760
    %2487 = vmatmul.mubr.f32.gmra.mxu0 %v2486
    %v2488 = vpop.f32.mrf.mxu0
    %v2489 = vadd.f32 %v2312, %v2488
    %v2490 = vpop.f32.mrf.mxu0
    %2491 = vmatprep.mubr.f32.mxu0 0.0
    %v2492 = vand.u32 %v1219, 4294901760
    %2493 = vmatmul.mubr.f32.gmra.mxu0 %v2492
    %v2494 = vpop.f32.mrf.mxu0
    %v2495 = vadd.f32 %v2318, %v2494
    %v2496 = vpop.f32.mrf.mxu0
    %2497 = vmatprep.mubr.f32.mxu0 0.0
    %v2498 = vand.u32 %v1221, 4294901760
    %2499 = vmatmul.mubr.f32.gmra.mxu0 %v2498
    %v2500 = vpop.f32.mrf.mxu0
    %v2501 = vadd.f32 %v2324, %v2500
    %v2502 = vpop.f32.mrf.mxu0
    %2503 = vmatprep.mubr.f32.mxu0 0.0
    %v2504 = vand.u32 %v1223, 4294901760
    %2505 = vmatmul.mubr.f32.gmra.mxu0 %v2504
    %v2506 = vpop.f32.mrf.mxu0
    %v2507 = vadd.f32 %v2330, %v2506
    %v2508 = vpop.f32.mrf.mxu0
    %2509 = vdwg.mxu0
    %v2510 = vmul.f32 %v2417, %v32
    %v2511 = vmul.f32 %v2423, %v33
    %v2512 = vmul.f32 %v2429, %v34
    %v2513 = vmul.f32 %v2435, %v35
    %v2514 = vmul.f32 %v2441, %v36
    %v2515 = vmul.f32 %v2447, %v37
    %v2516 = vmul.f32 %v2453, %v38
    %v2517 = vmul.f32 %v2459, %v39
    %v2518 = vmul.f32 %v2465, %v40
    %v2519 = vmul.f32 %v2471, %v41
    %v2520 = vmul.f32 %v2477, %v42
    %v2521 = vmul.f32 %v2483, %v43
    %v2522 = vmul.f32 %v2489, %v44
    %v2523 = vmul.f32 %v2495, %v45
    %v2524 = vmul.f32 %v2501, %v46
    %v2525 = vmul.f32 %v2507, %v47
    %vm2526 = vcmask 64512
    %v2527 = vsel %vm2526, %v2510, 0.0
    %v2528 = vsel %vm2526, %v2511, 0.0
    %v2529 = vadd.f32 %v2527, %v2528
    %v2530 = vsel %vm2526, %v2512, 0.0
    %v2531 = vadd.f32 %v2529, %v2530
    %v2532 = vsel %vm2526, %v2513, 0.0
    %v2533 = vadd.f32 %v2531, %v2532
    %v2534 = vsel %vm2526, %v2514, 0.0
    %v2535 = vadd.f32 %v2533, %v2534
    %v2536 = vsel %vm2526, %v2515, 0.0
    %v2537 = vadd.f32 %v2535, %v2536
    %v2538 = vsel %vm2526, %v2516, 0.0
    %v2539 = vadd.f32 %v2537, %v2538
    %v2540 = vsel %vm2526, %v2517, 0.0
    %v2541 = vadd.f32 %v2539, %v2540
    %v2542 = vsel %vm2526, %v2518, 0.0
    %v2543 = vadd.f32 %v2541, %v2542
    %v2544 = vsel %vm2526, %v2519, 0.0
    %v2545 = vadd.f32 %v2543, %v2544
    %v2546 = vsel %vm2526, %v2520, 0.0
    %v2547 = vadd.f32 %v2545, %v2546
    %v2548 = vsel %vm2526, %v2521, 0.0
    %v2549 = vadd.f32 %v2547, %v2548
    %v2550 = vsel %vm2526, %v2522, 0.0
    %v2551 = vadd.f32 %v2549, %v2550
    %v2552 = vsel %vm2526, %v2523, 0.0
    %v2553 = vadd.f32 %v2551, %v2552
    %v2554 = vsel %vm2526, %v2524, 0.0
    %v2555 = vadd.f32 %v2553, %v2554
    %v2556 = vsel %vm2526, %v2525, 0.0
    %v2557 = vadd.f32 %v2555, %v2556
    %v2558 = vrot.slane %v2557, 4
    %v2559 = vadd.f32 %v2557, %v2558
    %v2560 = vrot.slane %v2559, 2
    %v2561 = vadd.f32 %v2559, %v2560
    %v2562 = vrot.slane %v2561, 1
    %v2563 = vadd.f32 %v2561, %v2562
    %vm2564 = vcmask 57344
    %2565 = vst.msk [vmem:[#allocation2] sm:$0x1] %vm2564, %v2563
    // Predicated region
    $region14: #{tpu_custom_call.1} parent=1 // pred_check
      _
    $region15: #{tpu_custom_call.1} parent=1 // pred_check_branch
      %2567 = sbr.rel (0) target = $region17
    $region16: #{tpu_custom_call.1} parent=1 // pred_region
      %s2569 = ssub.s32 16, 16
      %2570 = vsyncadd [#allocation3], %s2569
      %s2572 = sshll.u32 [#allocation2], 4
      %s2573 = int_to_ptr.vmem [resolvable:$true] %s2572
      %2575 = dma.vmem_to_hbm [thread:$0]  %s2573, 16, %s3, [#allocation3]
    $region17: #{tpu_custom_call.1} parent=1 // pred_fallthru
      _
    // Predicated region
    $region18: #{tpu_custom_call.1} parent=1 // pred_check
      _
    $region19: #{tpu_custom_call.1} parent=1 // pred_check_branch
      %2577 = sbr.rel (0) target = $region21
    $region20: #{tpu_custom_call.1} parent=1 // pred_region
      %2578 = dma.done [#allocation3], 16
    $region21: #{tpu_custom_call.1} parent=1 // pred_fallthru
      _
    %2579 = vsyncpa [#allocation3], 1

</llo_original>
